<compile_context>
chip_gen: v7x
topology: tpu7x:2x2x1
jax: 0.10.0
libtpu: 0.0.40
codegen_flags: <defaults>
</compile_context>

<pallas_src>
import functools

import jax
import jax.numpy as jnp
from jax.experimental import pallas as pl
from jax.experimental.pallas import tpu as pltpu

_NEG_BIG = -1000000000.0   # matches the PyTorch reference's masked-fill value

# rows of the packed per-layer vector block hvec[L, 6, H]
_BO, _LN1G, _LN1B, _B2, _LN2G, _LN2B = range(6)


# ----------------------------------------------------------------------------- helpers
def _layernorm(x, g, b, eps=1e-12):
    mu = jnp.mean(x, axis=-1, keepdims=True)
    var = jnp.mean((x - mu) ** 2, axis=-1, keepdims=True)
    return (x - mu) * jax.lax.rsqrt(var + eps) * g + b


def _pick_vmem_limit():
    """Per-generation scoped-VMEM budget (v7x ~54 MiB, v5e/v6e ~100 MiB)."""
    try:
        cap = int(pltpu.get_tpu_info().vmem_capacity_bytes)
    except Exception:
        cap = 64 * 1024 * 1024
    return int(min(int(cap * 0.85), 100 * 1024 * 1024))


# ----------------------------------------------------------------------------- kernel
def fused_encoder_kernel(
        emb_ref, bias_ref, embln_ref,
        wqkv_ref, bqkv_ref, wo_ref, w1_ref, b1_ref, w2_ref, hvec_ref,
        out_ref, x_scr,
        *, num_heads, pool_strategy):
    """One grid step = (batch block, encoder layer).  Activation resident in x_scr."""
    layer = pl.program_id(1)
    M, H = x_scr.shape                       # M = Bt * S
    S = bias_ref.shape[-1]
    Bt = M // S
    hd = H // num_heads
    f32 = jnp.float32
    bf16 = jnp.bfloat16

    # ---- layer 0: embedding LayerNorm into the resident activation -------------
    @pl.when(layer == 0)
    def _():
        e = emb_ref[...].reshape(M, H)
        x_scr[...] = _layernorm(e, embln_ref[0:1, :], embln_ref[1:2, :])

    x = x_scr[...]                           # [M, H] f32, VMEM-resident
    xb = x.astype(bf16)
    bias = bias_ref[...]                     # [Bt, 1, S] additive key mask (0 / -1e9)

    # ---- fused QKV projection: one lane-dense matmul (scale folded into wq) ----
    qkv = jnp.dot(xb, wqkv_ref[...], preferred_element_type=f32) + bqkv_ref[...]

    # ---- per-head attention; output projection accumulated on the MXU ----------
    attn = None
    for h in range(num_heads):
        lo = h * hd
        qh = qkv[:, lo:lo + hd].reshape(Bt, S, hd).astype(bf16)
        kh = qkv[:, H + lo:H + lo + hd].reshape(Bt, S, hd).astype(bf16)
        vh = qkv[:, 2 * H + lo:2 * H + lo + hd].reshape(Bt, S, hd).astype(bf16)

        s = jnp.einsum('bqd,bkd->bqk', qh, kh, preferred_element_type=f32) + bias
        s = s - jnp.max(s, axis=-1, keepdims=True)
        p = jnp.exp(s)
        p = p * pl.reciprocal(jnp.sum(p, axis=-1, keepdims=True), approx=True)

        ctx = jnp.einsum('bqk,bkd->bqd', p.astype(bf16), vh,
                         preferred_element_type=f32)              # [Bt, S, hd]
        part = jnp.dot(ctx.reshape(M, hd).astype(bf16),
                       wo_ref[lo:lo + hd, :],                     # [hd, H] slice
                       preferred_element_type=f32)                # [M, H]
        attn = part if attn is None else attn + part

    attn = attn + hvec_ref[_BO:_BO + 1, :]
    h1 = _layernorm(x + attn, hvec_ref[_LN1G:_LN1G + 1, :], hvec_ref[_LN1B:_LN1B + 1, :])

    # ---- feed-forward -----------------------------------------------------------
    ff = jnp.dot(h1.astype(bf16), w1_ref[...], preferred_element_type=f32) + b1_ref[...]
    # TODO(synk): HF BERT uses exact erf GELU; tanh approximation used here.
    ff = jax.nn.gelu(ff, approximate=True)
    ff = (jnp.dot(ff.astype(bf16), w2_ref[...], preferred_element_type=f32)
          + hvec_ref[_B2:_B2 + 1, :])

    xn = _layernorm(h1 + ff, hvec_ref[_LN2G:_LN2G + 1, :], hvec_ref[_LN2B:_LN2B + 1, :])
    x_scr[...] = xn                          # stays resident for layer + 1

    # ---- last layer: fused pooling, lane-dense writeback -----------------------
    @pl.when(layer == pl.num_programs(1) - 1)
    def _():
        xn3 = xn.reshape(Bt, S, H)
        if pool_strategy is None:
            out_ref[...] = xn3
        elif pool_strategy == "cls":
            out_ref[...] = xn3[:, 0:1, :]
        elif pool_strategy == "mean":
            m = (bias >= -0.5).astype(f32)                        # [Bt, 1, S] valid-token mask
            summed = jnp.einsum('bos,bsh->boh', m, xn3,
                                preferred_element_type=f32)       # MXU matvec, no transpose
            denom = jnp.maximum(jnp.sum(m, axis=-1, keepdims=True), 1e-9)
            out_ref[...] = summed / denom
        else:  # "max"
            mt = jnp.transpose((bias >= -0.5).astype(f32), (0, 2, 1))   # [Bt, S, 1]
            xm = jnp.where(mt == 0.0, jnp.float32(_NEG_BIG), xn3)
            out_ref[...] = jnp.max(xm, axis=1, keepdims=True)


# ----------------------------------------------------------------------------- wrapper
def text_encoder_forward(params, input_ids, token_type_ids, attention_mask,
                         *, num_heads, pool_strategy, batch_block=None):
    if pool_strategy not in (None, "mean", "max", "cls"):
        raise ValueError(f"pool_strategy={pool_strategy} not supported")

    B, S = input_ids.shape
    H = params["word_emb"].shape[1]
    L = params["wqkv"].shape[0]
    F = params["w1"].shape[-1]

    Bt = batch_block if batch_block is not None else max(1, min(B, 8))
    nb = pl.cdiv(B, Bt)
    Bp = nb * Bt

    mask_f = attention_mask.astype(jnp.float32)
    # embedding lookups are gathers -> plain JAX glue feeding the kernel
    emb = (params["word_emb"][input_ids]
           + params["type_emb"][token_type_ids]
           + params["pos_emb"][:S][None, :, :])
    attn_bias = ((1.0 - mask_f) * _NEG_BIG)[:, None, :]           # [B, 1, S]

    if Bp != B:                                                    # pad batch to a multiple of Bt
        emb = jnp.pad(emb, ((0, Bp - B), (0, 0), (0, 0)))
        attn_bias = jnp.pad(attn_bias, ((0, Bp - B), (0, 0), (0, 0)),
                            constant_values=_NEG_BIG)

    if pool_strategy is None:
        out_shape = jax.ShapeDtypeStruct((Bp, S, H), jnp.float32)
        out_spec = pl.BlockSpec((Bt, S, H), lambda b, l: (b, 0, 0))
    else:
        out_shape = jax.ShapeDtypeStruct((Bp, 1, H), jnp.float32)
        out_spec = pl.BlockSpec((Bt, 1, H), lambda b, l: (b, 0, 0))

    def lspec(*shape):        # per-layer stacked param: squeeze the layer dim
        n = len(shape)
        return pl.BlockSpec((None,) + shape, lambda b, l, n=n: (l,) + (0,) * n)

    grid_spec = pltpu.PrefetchScalarGridSpec(
        num_scalar_prefetch=0,
        grid=(nb, L),                                   # (parallel batch blocks, layer sweep)
        in_specs=[
            pl.BlockSpec((Bt, S, H), lambda b, l: (b, 0, 0)),   # embeddings
            pl.BlockSpec((Bt, 1, S), lambda b, l: (b, 0, 0)),   # additive attn bias (+ pooling mask)
            pl.BlockSpec((2, H), lambda b, l: (0, 0)),          # emb LN gamma/beta
            lspec(H, 3 * H),            # wqkv (bf16, scale folded into q-columns)
            lspec(1, 3 * H),            # bqkv
            lspec(H, H),                # wo
            lspec(H, F),                # w1
            lspec(1, F),                # b1
            lspec(F, H),                # w2
            lspec(6, H),                # packed [bo, ln1g, ln1b, b2, ln2g, ln2b]
        ],
        out_specs=out_spec,
        scratch_shapes=[pltpu.VMEM((Bt * S, H), jnp.float32)],   # resident activation
    )

    out = pl.pallas_call(
        functools.partial(fused_encoder_kernel,
                          num_heads=num_heads, pool_strategy=pool_strategy),
        out_shape=out_shape,
        grid_spec=grid_spec,
        compiler_params=pltpu.CompilerParams(
            dimension_semantics=("parallel", "arbitrary"),
            vmem_limit_bytes=_pick_vmem_limit()),
    )(emb, attn_bias, params["emb_ln"],
      params["wqkv"], params["bqkv"], params["wo"],
      params["w1"], params["b1"], params["w2"], params["hvec"])

    if pool_strategy is None:
        return out[:B]                  # [B, S, H] == encoder_output[0]
    return out[:B, 0, :]                # [B, H]


# ----------------------------------------------------------------------------- params
def init_params(key, vocab, type_vocab, max_pos, hidden, ffn, num_layers, num_heads):
    """Synthetic, deterministic BERT-style weights in the kernel's packed layout."""
    hd = hidden // num_heads
    scale = 1.0 / float(hd) ** 0.5
    bf16 = jnp.bfloat16
    L = num_layers
    ks = iter(jax.random.split(key, 16))

    def nrm(shape, s=0.02):
        return s * jax.random.normal(next(ks), shape, dtype=jnp.float32)

    wq, wk, wv = nrm((L, hidden, hidden)), nrm((L, hidden, hidden)), nrm((L, hidden, hidden))
    bq = jnp.zeros((L, hidden), jnp.float32)
    bk = jnp.zeros((L, hidden), jnp.float32)
    bv = jnp.zeros((L, hidden), jnp.float32)

    # 1/sqrt(hd) folded into the Q projection (weights + bias) at init time.
    wqkv = jnp.concatenate([wq * scale, wk, wv], axis=-1).astype(bf16)       # [L, H, 3H]
    bqkv = jnp.concatenate([bq * scale, bk, bv], axis=-1)[:, None, :]        # [L, 1, 3H]

    bo = jnp.zeros((L, hidden), jnp.float32)
    b2 = jnp.zeros((L, hidden), jnp.float32)
    ln1g = jnp.ones((L, hidden), jnp.float32)
    ln1b = jnp.zeros((L, hidden), jnp.float32)
    ln2g = jnp.ones((L, hidden), jnp.float32)
    ln2b = jnp.zeros((L, hidden), jnp.float32)
    hvec = jnp.stack([bo, ln1g, ln1b, b2, ln2g, ln2b], axis=1)               # [L, 6, H]

    return {
        "word_emb": nrm((vocab, hidden)),
        "type_emb": nrm((type_vocab, hidden)),
        "pos_emb": nrm((max_pos, hidden)),
        "emb_ln": jnp.stack([jnp.ones((hidden,), jnp.float32),
                             jnp.zeros((hidden,), jnp.float32)], axis=0),    # [2, H]
        "wqkv": wqkv,
        "bqkv": bqkv,
        "wo": nrm((L, hidden, hidden)).astype(bf16),
        "w1": nrm((L, hidden, ffn)).astype(bf16),
        "b1": jnp.zeros((L, 1, ffn), jnp.float32),
        "w2": nrm((L, ffn, hidden)).astype(bf16),
        "hvec": hvec,
    }


# ----------------------------------------------------------------------------- main
if __name__ == "__main__":
    VOCAB, TYPE_VOCAB, MAX_POS = 50, 2, 16
    HIDDEN, FFN, HEADS, LAYERS = 128, 512, 2, 2     # lane-dense H / FFN (x128)
    B, S, BT = 4, 8, 2                              # 2 batch blocks -> even parallel extent
    POOL = "mean"   # matches TextEncoder(pool_strategy='mean')

    key = jax.random.PRNGKey(0)
    k_par, k_ids, k_tt = jax.random.split(key, 3)

    params = init_params(k_par, VOCAB, TYPE_VOCAB, MAX_POS, HIDDEN, FFN, LAYERS, HEADS)

    input_ids = jax.random.randint(k_ids, (B, S), 0, VOCAB, dtype=jnp.int32)
    token_type_ids = jax.random.randint(k_tt, (B, S), 0, TYPE_VOCAB, dtype=jnp.int32)
    attention_mask = jnp.array(
        [[1, 1, 1, 1, 1, 1, 0, 0],
         [1, 1, 1, 1, 0, 0, 0, 0],
         [1, 1, 1, 1, 1, 1, 1, 1],
         [1, 1, 1, 0, 0, 0, 0, 0]], dtype=jnp.int32)

    out = text_encoder_forward(params, input_ids, token_type_ids, attention_mask,
                               num_heads=HEADS, pool_strategy=POOL, batch_block=BT)
    out = jax.block_until_ready(out)
    assert out.shape == (B, HIDDEN), out.shape
    assert bool(jnp.all(jnp.isfinite(out)))
    print("KERNEL_OK")
</pallas_src>

<mosaic_0001>
module attributes {stable_mosaic.version = 11 : i64} {
  func.func @fused_encoder_kernel(%arg0: i32, %arg1: i32, %arg2: memref<2x8x128xf32, #tpu.memory_space<vmem>>, %arg3: memref<2x1x8xf32, #tpu.memory_space<vmem>>, %arg4: memref<2x128xf32, #tpu.memory_space<vmem>>, %arg5: memref<1x128x384xbf16, #tpu.memory_space<vmem>>, %arg6: memref<1x1x384xf32, #tpu.memory_space<vmem>>, %arg7: memref<1x128x128xbf16, #tpu.memory_space<vmem>>, %arg8: memref<1x128x512xbf16, #tpu.memory_space<vmem>>, %arg9: memref<1x1x512xf32, #tpu.memory_space<vmem>>, %arg10: memref<1x512x128xbf16, #tpu.memory_space<vmem>>, %arg11: memref<1x6x128xf32, #tpu.memory_space<vmem>>, %arg12: memref<2x1x128xf32, #tpu.memory_space<vmem>>, %arg13: memref<16x128xf32, #tpu.memory_space<vmem>>) attributes {dimension_semantics = [#tpu.dimension_semantics<parallel>, #tpu.dimension_semantics<arbitrary>], iteration_bounds = array<i64: 2, 2>, scalar_prefetch = 0 : i64, scratch_operands = 1 : i64, tpu.core_type = #tpu.core_type<tc>, window_params = [{transform_indices = @transform_0, window_bounds = array<i64: 2, 8, 128>}, {transform_indices = @transform_1, window_bounds = array<i64: 2, 1, 8>}, {pipeline_mode = #tpu.pipeline_mode<synchronous>, transform_indices = @transform_2, window_bounds = array<i64: 2, 128>}, {transform_indices = @transform_3, window_bounds = array<i64: 1, 128, 384>}, {transform_indices = @transform_4, window_bounds = array<i64: 1, 1, 384>}, {transform_indices = @transform_5, window_bounds = array<i64: 1, 128, 128>}, {transform_indices = @transform_6, window_bounds = array<i64: 1, 128, 512>}, {transform_indices = @transform_7, window_bounds = array<i64: 1, 1, 512>}, {transform_indices = @transform_8, window_bounds = array<i64: 1, 512, 128>}, {transform_indices = @transform_9, window_bounds = array<i64: 1, 6, 128>}, {transform_indices = @transform_10, window_bounds = array<i64: 2, 1, 128>}]} {
    %c0_i32 = arith.constant 0 : i32
    %0 = arith.cmpi eq, %arg1, %c0_i32 : i32
    %1 = arith.extui %0 : i1 to i32
    %c0_i32_0 = arith.constant 0 : i32
    %2 = arith.cmpi ne, %1, %c0_i32_0 : i32
    scf.if %2 {
      %c0_67 = arith.constant 0 : index
      %c0_68 = arith.constant 0 : index
      %c0_69 = arith.constant 0 : index
      %163 = vector.load %arg2[%c0_67, %c0_68, %c0_69] : memref<2x8x128xf32, #tpu.memory_space<vmem>>, vector<2x8x128xf32>
      %164 = vector.shape_cast %163 : vector<2x8x128xf32> to vector<16x128xf32>
      %c0_70 = arith.constant 0 : index
      %c0_71 = arith.constant 0 : index
      %165 = vector.load %arg4[%c0_70, %c0_71] : memref<2x128xf32, #tpu.memory_space<vmem>>, vector<1x128xf32>
      %c1_72 = arith.constant 1 : index
      %c0_73 = arith.constant 0 : index
      %166 = vector.load %arg4[%c1_72, %c0_73] : memref<2x128xf32, #tpu.memory_space<vmem>>, vector<1x128xf32>
      %cst_74 = arith.constant dense<0.000000e+00> : vector<16xf32>
      %167 = vector.multi_reduction <add>, %164, %cst_74 [1] : vector<16x128xf32> to vector<16xf32>
      %168 = vector.shape_cast %167 : vector<16xf32> to vector<16x1xf32>
      %cst_75 = arith.constant 1.280000e+02 : f32
      %169 = vector.broadcast %cst_75 : f32 to vector<16x1xf32>
      %170 = arith.divf %168, %169 : vector<16x1xf32>
      %171 = vector.broadcast %170 : vector<16x1xf32> to vector<16x128xf32>
      %172 = arith.subf %164, %171 : vector<16x128xf32>
      %173 = arith.mulf %172, %172 : vector<16x128xf32>
      %cst_76 = arith.constant dense<0.000000e+00> : vector<16xf32>
      %174 = vector.multi_reduction <add>, %173, %cst_76 [1] : vector<16x128xf32> to vector<16xf32>
      %175 = vector.shape_cast %174 : vector<16xf32> to vector<16x1xf32>
      %cst_77 = arith.constant 1.280000e+02 : f32
      %176 = vector.broadcast %cst_77 : f32 to vector<16x1xf32>
      %177 = arith.divf %175, %176 : vector<16x1xf32>
      %178 = vector.broadcast %170 : vector<16x1xf32> to vector<16x128xf32>
      %179 = arith.subf %164, %178 : vector<16x128xf32>
      %cst_78 = arith.constant 9.99999996E-13 : f32
      %180 = vector.broadcast %cst_78 : f32 to vector<16x1xf32>
      %181 = arith.addf %177, %180 : vector<16x1xf32>
      %182 = math.rsqrt %181 : vector<16x1xf32>
      %183 = vector.broadcast %182 : vector<16x1xf32> to vector<16x128xf32>
      %184 = arith.mulf %179, %183 : vector<16x128xf32>
      %185 = vector.broadcast %165 : vector<1x128xf32> to vector<16x128xf32>
      %186 = arith.mulf %184, %185 : vector<16x128xf32>
      %187 = vector.broadcast %166 : vector<1x128xf32> to vector<16x128xf32>
      %188 = arith.addf %186, %187 : vector<16x128xf32>
      %c0_79 = arith.constant 0 : index
      %c0_80 = arith.constant 0 : index
      %189 = vector.load %arg13[%c0_79, %c0_80] : memref<16x128xf32, #tpu.memory_space<vmem>>, vector<16x128xf32>
      tpu.vector_store %arg13[%c0_79, %c0_80], %188 {strides = array<i32>} : memref<16x128xf32, #tpu.memory_space<vmem>>, vector<16x128xf32>,
    } else {
    }
    %c0 = arith.constant 0 : index
    %c0_1 = arith.constant 0 : index
    %3 = vector.load %arg13[%c0, %c0_1] : memref<16x128xf32, #tpu.memory_space<vmem>>, vector<16x128xf32>
    %4 = arith.truncf %3 : vector<16x128xf32> to vector<16x128xbf16>
    %c0_2 = arith.constant 0 : index
    %c0_3 = arith.constant 0 : index
    %c0_4 = arith.constant 0 : index
    %5 = vector.load %arg3[%c0_2, %c0_3, %c0_4] : memref<2x1x8xf32, #tpu.memory_space<vmem>>, vector<2x1x8xf32>
    %c0_5 = arith.constant 0 : index
    %c0_6 = arith.constant 0 : index
    %c0_7 = arith.constant 0 : index
    %6 = vector.load %arg5[%c0_5, %c0_6, %c0_7] : memref<1x128x384xbf16, #tpu.memory_space<vmem>>, vector<1x128x384xbf16>
    %7 = vector.shape_cast %6 : vector<1x128x384xbf16> to vector<128x384xbf16>
    %cst = arith.constant dense<0.000000e+00> : vector<16x384xf32>
    %8 = tpu.matmul %4, %7, %cst {dimension_numbers = #tpu.dot_dimension_numbers<[1], [0], [0], [1], [0, 0, 1, 1], [], []>} : vector<16x128xbf16>, vector<128x384xbf16>, vector<16x384xf32> -> vector<16x384xf32>
    %c0_8 = arith.constant 0 : index
    %c0_9 = arith.constant 0 : index
    %c0_10 = arith.constant 0 : index
    %9 = vector.load %arg6[%c0_8, %c0_9, %c0_10] : memref<1x1x384xf32, #tpu.memory_space<vmem>>, vector<1x1x384xf32>
    %10 = vector.shape_cast %9 : vector<1x1x384xf32> to vector<1x384xf32>
    %11 = vector.broadcast %10 : vector<1x384xf32> to vector<16x384xf32>
    %12 = arith.addf %8, %11 : vector<16x384xf32>
    %13 = vector.extract_strided_slice %12 {offsets = [0, 0], sizes = [16, 64], strides = [1, 1]} : vector<16x384xf32> to vector<16x64xf32>
    %14 = vector.shape_cast %13 : vector<16x64xf32> to vector<2x8x64xf32>
    %15 = arith.truncf %14 : vector<2x8x64xf32> to vector<2x8x64xbf16>
    %16 = vector.extract_strided_slice %12 {offsets = [0, 128], sizes = [16, 64], strides = [1, 1]} : vector<16x384xf32> to vector<16x64xf32>
    %17 = vector.shape_cast %16 : vector<16x64xf32> to vector<2x8x64xf32>
    %18 = arith.truncf %17 : vector<2x8x64xf32> to vector<2x8x64xbf16>
    %19 = vector.extract_strided_slice %12 {offsets = [0, 256], sizes = [16, 64], strides = [1, 1]} : vector<16x384xf32> to vector<16x64xf32>
    %20 = vector.shape_cast %19 : vector<16x64xf32> to vector<2x8x64xf32>
    %21 = arith.truncf %20 : vector<2x8x64xf32> to vector<2x8x64xbf16>
    "tpu.trace_start"() <{level = 10 : i32, message = "bqd,bkd->bqk"}> : () -> ()
    %cst_11 = arith.constant dense<0.000000e+00> : vector<2x8x8xf32>
    %22 = tpu.matmul %15, %18, %cst_11 {dimension_numbers = #tpu.dot_dimension_numbers<[2], [2], [1], [1], [0, 0, 0, 1, 1, 1], [0], [0]>} : vector<2x8x64xbf16>, vector<2x8x64xbf16>, vector<2x8x8xf32> -> vector<2x8x8xf32>
    "tpu.trace_stop"() : () -> ()
    %23 = vector.broadcast %5 : vector<2x1x8xf32> to vector<2x8x8xf32>
    %24 = arith.addf %22, %23 : vector<2x8x8xf32>
    %cst_12 = arith.constant dense<0xFF800000> : vector<2x8xf32>
    %25 = vector.multi_reduction <maximumf>, %24, %cst_12 [2] : vector<2x8x8xf32> to vector<2x8xf32>
    %26 = vector.shape_cast %25 : vector<2x8xf32> to vector<2x8x1xf32>
    %27 = vector.broadcast %26 : vector<2x8x1xf32> to vector<2x8x8xf32>
    %28 = arith.subf %24, %27 : vector<2x8x8xf32>
    %29 = math.exp %28 : vector<2x8x8xf32>
    %cst_13 = arith.constant dense<0.000000e+00> : vector<2x8xf32>
    %30 = vector.multi_reduction <add>, %29, %cst_13 [2] : vector<2x8x8xf32> to vector<2x8xf32>
    %31 = vector.shape_cast %30 : vector<2x8xf32> to vector<2x8x1xf32>
    %32 = tpu.reciprocal %31 {approx = true} : vector<2x8x1xf32> -> vector<2x8x1xf32>
    %33 = vector.broadcast %32 : vector<2x8x1xf32> to vector<2x8x8xf32>
    %34 = arith.mulf %29, %33 : vector<2x8x8xf32>
    %35 = arith.truncf %34 : vector<2x8x8xf32> to vector<2x8x8xbf16>
    "tpu.trace_start"() <{level = 10 : i32, message = "bqk,bkd->bqd"}> : () -> ()
    %cst_14 = arith.constant dense<0.000000e+00> : vector<2x8x64xf32>
    %36 = tpu.matmul %35, %21, %cst_14 {dimension_numbers = #tpu.dot_dimension_numbers<[2], [1], [1], [2], [0, 0, 0, 1, 1, 2], [0], [0]>} : vector<2x8x8xbf16>, vector<2x8x64xbf16>, vector<2x8x64xf32> -> vector<2x8x64xf32>
    "tpu.trace_stop"() : () -> ()
    %37 = vector.shape_cast %36 : vector<2x8x64xf32> to vector<16x64xf32>
    %38 = arith.truncf %37 : vector<16x64xf32> to vector<16x64xbf16>
    %c0_15 = arith.constant 0 : index
    %c0_16 = arith.constant 0 : index
    %c0_17 = arith.constant 0 : index
    %39 = vector.load %arg7[%c0_15, %c0_16, %c0_17] : memref<1x128x128xbf16, #tpu.memory_space<vmem>>, vector<1x64x128xbf16>
    %40 = vector.shape_cast %39 : vector<1x64x128xbf16> to vector<64x128xbf16>
    %cst_18 = arith.constant dense<0.000000e+00> : vector<16x128xf32>
    %41 = tpu.matmul %38, %40, %cst_18 {dimension_numbers = #tpu.dot_dimension_numbers<[1], [0], [0], [1], [0, 0, 1, 1], [], []>} : vector<16x64xbf16>, vector<64x128xbf16>, vector<16x128xf32> -> vector<16x128xf32>
    %42 = vector.extract_strided_slice %12 {offsets = [0, 64], sizes = [16, 64], strides = [1, 1]} : vector<16x384xf32> to vector<16x64xf32>
    %43 = vector.shape_cast %42 : vector<16x64xf32> to vector<2x8x64xf32>
    %44 = arith.truncf %43 : vector<2x8x64xf32> to vector<2x8x64xbf16>
    %45 = vector.extract_strided_slice %12 {offsets = [0, 192], sizes = [16, 64], strides = [1, 1]} : vector<16x384xf32> to vector<16x64xf32>
    %46 = vector.shape_cast %45 : vector<16x64xf32> to vector<2x8x64xf32>
    %47 = arith.truncf %46 : vector<2x8x64xf32> to vector<2x8x64xbf16>
    %48 = vector.extract_strided_slice %12 {offsets = [0, 320], sizes = [16, 64], strides = [1, 1]} : vector<16x384xf32> to vector<16x64xf32>
    %49 = vector.shape_cast %48 : vector<16x64xf32> to vector<2x8x64xf32>
    %50 = arith.truncf %49 : vector<2x8x64xf32> to vector<2x8x64xbf16>
    "tpu.trace_start"() <{level = 10 : i32, message = "bqd,bkd->bqk"}> : () -> ()
    %cst_19 = arith.constant dense<0.000000e+00> : vector<2x8x8xf32>
    %51 = tpu.matmul %44, %47, %cst_19 {dimension_numbers = #tpu.dot_dimension_numbers<[2], [2], [1], [1], [0, 0, 0, 1, 1, 1], [0], [0]>} : vector<2x8x64xbf16>, vector<2x8x64xbf16>, vector<2x8x8xf32> -> vector<2x8x8xf32>
    "tpu.trace_stop"() : () -> ()
    %52 = vector.broadcast %5 : vector<2x1x8xf32> to vector<2x8x8xf32>
    %53 = arith.addf %51, %52 : vector<2x8x8xf32>
    %cst_20 = arith.constant dense<0xFF800000> : vector<2x8xf32>
    %54 = vector.multi_reduction <maximumf>, %53, %cst_20 [2] : vector<2x8x8xf32> to vector<2x8xf32>
    %55 = vector.shape_cast %54 : vector<2x8xf32> to vector<2x8x1xf32>
    %56 = vector.broadcast %55 : vector<2x8x1xf32> to vector<2x8x8xf32>
    %57 = arith.subf %53, %56 : vector<2x8x8xf32>
    %58 = math.exp %57 : vector<2x8x8xf32>
    %cst_21 = arith.constant dense<0.000000e+00> : vector<2x8xf32>
    %59 = vector.multi_reduction <add>, %58, %cst_21 [2] : vector<2x8x8xf32> to vector<2x8xf32>
    %60 = vector.shape_cast %59 : vector<2x8xf32> to vector<2x8x1xf32>
    %61 = tpu.reciprocal %60 {approx = true} : vector<2x8x1xf32> -> vector<2x8x1xf32>
    %62 = vector.broadcast %61 : vector<2x8x1xf32> to vector<2x8x8xf32>
    %63 = arith.mulf %58, %62 : vector<2x8x8xf32>
    %64 = arith.truncf %63 : vector<2x8x8xf32> to vector<2x8x8xbf16>
    "tpu.trace_start"() <{level = 10 : i32, message = "bqk,bkd->bqd"}> : () -> ()
    %cst_22 = arith.constant dense<0.000000e+00> : vector<2x8x64xf32>
    %65 = tpu.matmul %64, %50, %cst_22 {dimension_numbers = #tpu.dot_dimension_numbers<[2], [1], [1], [2], [0, 0, 0, 1, 1, 2], [0], [0]>} : vector<2x8x8xbf16>, vector<2x8x64xbf16>, vector<2x8x64xf32> -> vector<2x8x64xf32>
    "tpu.trace_stop"() : () -> ()
    %66 = vector.shape_cast %65 : vector<2x8x64xf32> to vector<16x64xf32>
    %67 = arith.truncf %66 : vector<16x64xf32> to vector<16x64xbf16>
    %c0_23 = arith.constant 0 : index
    %c64 = arith.constant 64 : index
    %c0_24 = arith.constant 0 : index
    %68 = vector.load %arg7[%c0_23, %c64, %c0_24] : memref<1x128x128xbf16, #tpu.memory_space<vmem>>, vector<1x64x128xbf16>
    %69 = vector.shape_cast %68 : vector<1x64x128xbf16> to vector<64x128xbf16>
    %cst_25 = arith.constant dense<0.000000e+00> : vector<16x128xf32>
    %70 = tpu.matmul %67, %69, %cst_25 {dimension_numbers = #tpu.dot_dimension_numbers<[1], [0], [0], [1], [0, 0, 1, 1], [], []>} : vector<16x64xbf16>, vector<64x128xbf16>, vector<16x128xf32> -> vector<16x128xf32>
    %71 = arith.addf %41, %70 : vector<16x128xf32>
    %c0_26 = arith.constant 0 : index
    %c0_27 = arith.constant 0 : index
    %c0_28 = arith.constant 0 : index
    %72 = vector.load %arg11[%c0_26, %c0_27, %c0_28] : memref<1x6x128xf32, #tpu.memory_space<vmem>>, vector<1x1x128xf32>
    %73 = vector.shape_cast %72 : vector<1x1x128xf32> to vector<1x128xf32>
    %74 = vector.broadcast %73 : vector<1x128xf32> to vector<16x128xf32>
    %75 = arith.addf %71, %74 : vector<16x128xf32>
    %76 = arith.addf %3, %75 : vector<16x128xf32>
    %c0_29 = arith.constant 0 : index
    %c1 = arith.constant 1 : index
    %c0_30 = arith.constant 0 : index
    %77 = vector.load %arg11[%c0_29, %c1, %c0_30] : memref<1x6x128xf32, #tpu.memory_space<vmem>>, vector<1x1x128xf32>
    %78 = vector.shape_cast %77 : vector<1x1x128xf32> to vector<1x128xf32>
    %c0_31 = arith.constant 0 : index
    %c2 = arith.constant 2 : index
    %c0_32 = arith.constant 0 : index
    %79 = vector.load %arg11[%c0_31, %c2, %c0_32] : memref<1x6x128xf32, #tpu.memory_space<vmem>>, vector<1x1x128xf32>
    %80 = vector.shape_cast %79 : vector<1x1x128xf32> to vector<1x128xf32>
    %cst_33 = arith.constant dense<0.000000e+00> : vector<16xf32>
    %81 = vector.multi_reduction <add>, %76, %cst_33 [1] : vector<16x128xf32> to vector<16xf32>
    %82 = vector.shape_cast %81 : vector<16xf32> to vector<16x1xf32>
    %cst_34 = arith.constant 1.280000e+02 : f32
    %83 = vector.broadcast %cst_34 : f32 to vector<16x1xf32>
    %84 = arith.divf %82, %83 : vector<16x1xf32>
    %85 = vector.broadcast %84 : vector<16x1xf32> to vector<16x128xf32>
    %86 = arith.subf %76, %85 : vector<16x128xf32>
    %87 = arith.mulf %86, %86 : vector<16x128xf32>
    %cst_35 = arith.constant dense<0.000000e+00> : vector<16xf32>
    %88 = vector.multi_reduction <add>, %87, %cst_35 [1] : vector<16x128xf32> to vector<16xf32>
    %89 = vector.shape_cast %88 : vector<16xf32> to vector<16x1xf32>
    %cst_36 = arith.constant 1.280000e+02 : f32
    %90 = vector.broadcast %cst_36 : f32 to vector<16x1xf32>
    %91 = arith.divf %89, %90 : vector<16x1xf32>
    %92 = vector.broadcast %84 : vector<16x1xf32> to vector<16x128xf32>
    %93 = arith.subf %76, %92 : vector<16x128xf32>
    %cst_37 = arith.constant 9.99999996E-13 : f32
    %94 = vector.broadcast %cst_37 : f32 to vector<16x1xf32>
    %95 = arith.addf %91, %94 : vector<16x1xf32>
    %96 = math.rsqrt %95 : vector<16x1xf32>
    %97 = vector.broadcast %96 : vector<16x1xf32> to vector<16x128xf32>
    %98 = arith.mulf %93, %97 : vector<16x128xf32>
    %99 = vector.broadcast %78 : vector<1x128xf32> to vector<16x128xf32>
    %100 = arith.mulf %98, %99 : vector<16x128xf32>
    %101 = vector.broadcast %80 : vector<1x128xf32> to vector<16x128xf32>
    %102 = arith.addf %100, %101 : vector<16x128xf32>
    %103 = arith.truncf %102 : vector<16x128xf32> to vector<16x128xbf16>
    %c0_38 = arith.constant 0 : index
    %c0_39 = arith.constant 0 : index
    %c0_40 = arith.constant 0 : index
    %104 = vector.load %arg8[%c0_38, %c0_39, %c0_40] : memref<1x128x512xbf16, #tpu.memory_space<vmem>>, vector<1x128x512xbf16>
    %105 = vector.shape_cast %104 : vector<1x128x512xbf16> to vector<128x512xbf16>
    %cst_41 = arith.constant dense<0.000000e+00> : vector<16x512xf32>
    %106 = tpu.matmul %103, %105, %cst_41 {dimension_numbers = #tpu.dot_dimension_numbers<[1], [0], [0], [1], [0, 0, 1, 1], [], []>} : vector<16x128xbf16>, vector<128x512xbf16>, vector<16x512xf32> -> vector<16x512xf32>
    %c0_42 = arith.constant 0 : index
    %c0_43 = arith.constant 0 : index
    %c0_44 = arith.constant 0 : index
    %107 = vector.load %arg9[%c0_42, %c0_43, %c0_44] : memref<1x1x512xf32, #tpu.memory_space<vmem>>, vector<1x1x512xf32>
    %108 = vector.shape_cast %107 : vector<1x1x512xf32> to vector<1x512xf32>
    %109 = vector.broadcast %108 : vector<1x512xf32> to vector<16x512xf32>
    %110 = arith.addf %106, %109 : vector<16x512xf32>
    %111 = arith.mulf %110, %110 : vector<16x512xf32>
    %112 = arith.mulf %110, %111 : vector<16x512xf32>
    %cst_45 = arith.constant 4.471500e-02 : f32
    %113 = vector.broadcast %cst_45 : f32 to vector<16x512xf32>
    %114 = arith.mulf %113, %112 : vector<16x512xf32>
    %115 = arith.addf %110, %114 : vector<16x512xf32>
    %cst_46 = arith.constant 0.797884583 : f32
    %116 = vector.broadcast %cst_46 : f32 to vector<16x512xf32>
    %117 = arith.mulf %116, %115 : vector<16x512xf32>
    %118 = math.tanh %117 : vector<16x512xf32>
    %cst_47 = arith.constant 1.000000e+00 : f32
    %119 = vector.broadcast %cst_47 : f32 to vector<16x512xf32>
    %120 = arith.addf %119, %118 : vector<16x512xf32>
    %cst_48 = arith.constant 5.000000e-01 : f32
    %121 = vector.broadcast %cst_48 : f32 to vector<16x512xf32>
    %122 = arith.mulf %121, %120 : vector<16x512xf32>
    %123 = arith.mulf %110, %122 : vector<16x512xf32>
    %124 = arith.truncf %123 : vector<16x512xf32> to vector<16x512xbf16>
    %c0_49 = arith.constant 0 : index
    %c0_50 = arith.constant 0 : index
    %c0_51 = arith.constant 0 : index
    %125 = vector.load %arg10[%c0_49, %c0_50, %c0_51] : memref<1x512x128xbf16, #tpu.memory_space<vmem>>, vector<1x512x128xbf16>
    %126 = vector.shape_cast %125 : vector<1x512x128xbf16> to vector<512x128xbf16>
    %cst_52 = arith.constant dense<0.000000e+00> : vector<16x128xf32>
    %127 = tpu.matmul %124, %126, %cst_52 {dimension_numbers = #tpu.dot_dimension_numbers<[1], [0], [0], [1], [0, 0, 1, 1], [], []>} : vector<16x512xbf16>, vector<512x128xbf16>, vector<16x128xf32> -> vector<16x128xf32>
    %c0_53 = arith.constant 0 : index
    %c3 = arith.constant 3 : index
    %c0_54 = arith.constant 0 : index
    %128 = vector.load %arg11[%c0_53, %c3, %c0_54] : memref<1x6x128xf32, #tpu.memory_space<vmem>>, vector<1x1x128xf32>
    %129 = vector.shape_cast %128 : vector<1x1x128xf32> to vector<1x128xf32>
    %130 = vector.broadcast %129 : vector<1x128xf32> to vector<16x128xf32>
    %131 = arith.addf %127, %130 : vector<16x128xf32>
    %132 = arith.addf %102, %131 : vector<16x128xf32>
    %c0_55 = arith.constant 0 : index
    %c4 = arith.constant 4 : index
    %c0_56 = arith.constant 0 : index
    %133 = vector.load %arg11[%c0_55, %c4, %c0_56] : memref<1x6x128xf32, #tpu.memory_space<vmem>>, vector<1x1x128xf32>
    %134 = vector.shape_cast %133 : vector<1x1x128xf32> to vector<1x128xf32>
    %c0_57 = arith.constant 0 : index
    %c5 = arith.constant 5 : index
    %c0_58 = arith.constant 0 : index
    %135 = vector.load %arg11[%c0_57, %c5, %c0_58] : memref<1x6x128xf32, #tpu.memory_space<vmem>>, vector<1x1x128xf32>
    %136 = vector.shape_cast %135 : vector<1x1x128xf32> to vector<1x128xf32>
    %cst_59 = arith.constant dense<0.000000e+00> : vector<16xf32>
    %137 = vector.multi_reduction <add>, %132, %cst_59 [1] : vector<16x128xf32> to vector<16xf32>
    %138 = vector.shape_cast %137 : vector<16xf32> to vector<16x1xf32>
    %cst_60 = arith.constant 1.280000e+02 : f32
    %139 = vector.broadcast %cst_60 : f32 to vector<16x1xf32>
    %140 = arith.divf %138, %139 : vector<16x1xf32>
    %141 = vector.broadcast %140 : vector<16x1xf32> to vector<16x128xf32>
    %142 = arith.subf %132, %141 : vector<16x128xf32>
    %143 = arith.mulf %142, %142 : vector<16x128xf32>
    %cst_61 = arith.constant dense<0.000000e+00> : vector<16xf32>
    %144 = vector.multi_reduction <add>, %143, %cst_61 [1] : vector<16x128xf32> to vector<16xf32>
    %145 = vector.shape_cast %144 : vector<16xf32> to vector<16x1xf32>
    %cst_62 = arith.constant 1.280000e+02 : f32
    %146 = vector.broadcast %cst_62 : f32 to vector<16x1xf32>
    %147 = arith.divf %145, %146 : vector<16x1xf32>
    %148 = vector.broadcast %140 : vector<16x1xf32> to vector<16x128xf32>
    %149 = arith.subf %132, %148 : vector<16x128xf32>
    %cst_63 = arith.constant 9.99999996E-13 : f32
    %150 = vector.broadcast %cst_63 : f32 to vector<16x1xf32>
    %151 = arith.addf %147, %150 : vector<16x1xf32>
    %152 = math.rsqrt %151 : vector<16x1xf32>
    %153 = vector.broadcast %152 : vector<16x1xf32> to vector<16x128xf32>
    %154 = arith.mulf %149, %153 : vector<16x128xf32>
    %155 = vector.broadcast %134 : vector<1x128xf32> to vector<16x128xf32>
    %156 = arith.mulf %154, %155 : vector<16x128xf32>
    %157 = vector.broadcast %136 : vector<1x128xf32> to vector<16x128xf32>
    %158 = arith.addf %156, %157 : vector<16x128xf32>
    %c0_64 = arith.constant 0 : index
    %c0_65 = arith.constant 0 : index
    %159 = vector.load %arg13[%c0_64, %c0_65] : memref<16x128xf32, #tpu.memory_space<vmem>>, vector<16x128xf32>
    tpu.vector_store %arg13[%c0_64, %c0_65], %158 {strides = array<i32>} : memref<16x128xf32, #tpu.memory_space<vmem>>, vector<16x128xf32>,
    %c1_i32 = arith.constant 1 : i32
    %160 = arith.cmpi eq, %arg1, %c1_i32 : i32
    %161 = arith.extui %160 : i1 to i32
    %c0_i32_66 = arith.constant 0 : i32
    %162 = arith.cmpi ne, %161, %c0_i32_66 : i32
    scf.if %162 {
      %163 = vector.shape_cast %158 : vector<16x128xf32> to vector<2x8x128xf32>
      %cst_67 = arith.constant -5.000000e-01 : f32
      %164 = vector.broadcast %cst_67 : f32 to vector<2x1x8xf32>
      %165 = arith.cmpf oge, %5, %164 : vector<2x1x8xf32>
      %166 = arith.extui %165 : vector<2x1x8xi1> to vector<2x1x8xi32>
      %167 = arith.sitofp %166 : vector<2x1x8xi32> to vector<2x1x8xf32>
      "tpu.trace_start"() <{level = 10 : i32, message = "bos,bsh->boh"}> : () -> ()
      %cst_68 = arith.constant dense<0.000000e+00> : vector<2x1x128xf32>
      %168 = tpu.matmul %167, %163, %cst_68 {dimension_numbers = #tpu.dot_dimension_numbers<[2], [1], [1], [2], [0, 0, 0, 1, 1, 2], [0], [0]>} : vector<2x1x8xf32>, vector<2x8x128xf32>, vector<2x1x128xf32> -> vector<2x1x128xf32>
      "tpu.trace_stop"() : () -> ()
      %cst_69 = arith.constant dense<0.000000e+00> : vector<2x1xf32>
      %169 = vector.multi_reduction <add>, %167, %cst_69 [2] : vector<2x1x8xf32> to vector<2x1xf32>
      %170 = vector.shape_cast %169 : vector<2x1xf32> to vector<2x1x1xf32>
      %cst_70 = arith.constant 9.99999971E-10 : f32
      %171 = vector.broadcast %cst_70 : f32 to vector<2x1x1xf32>
      %172 = arith.maximumf %170, %171 : vector<2x1x1xf32>
      %173 = vector.broadcast %172 : vector<2x1x1xf32> to vector<2x1x128xf32>
      %174 = arith.divf %168, %173 : vector<2x1x128xf32>
      %c0_71 = arith.constant 0 : index
      %c0_72 = arith.constant 0 : index
      %c0_73 = arith.constant 0 : index
      %175 = vector.load %arg12[%c0_71, %c0_72, %c0_73] : memref<2x1x128xf32, #tpu.memory_space<vmem>>, vector<2x1x128xf32>
      tpu.vector_store %arg12[%c0_71, %c0_72, %c0_73], %174 {strides = array<i32>} : memref<2x1x128xf32, #tpu.memory_space<vmem>>, vector<2x1x128xf32>,
    } else {
    }
    return
  }
  func.func @transform_0(%arg0: i32, %arg1: i32) -> (i32, i32, i32) {
    %c0_i32 = arith.constant 0 : i32
    %c0_i32_0 = arith.constant 0 : i32
    %c0_i32_1 = arith.constant 0 : i32
    return %arg0, %c0_i32, %c0_i32_0 : i32, i32, i32
  }
  func.func @transform_1(%arg0: i32, %arg1: i32) -> (i32, i32, i32) {
    %c0_i32 = arith.constant 0 : i32
    %c0_i32_0 = arith.constant 0 : i32
    %c0_i32_1 = arith.constant 0 : i32
    return %arg0, %c0_i32, %c0_i32_0 : i32, i32, i32
  }
  func.func @transform_2(%arg0: i32, %arg1: i32) -> (i32, i32) {
    %c0_i32 = arith.constant 0 : i32
    %c0_i32_0 = arith.constant 0 : i32
    %c0_i32_1 = arith.constant 0 : i32
    return %c0_i32, %c0_i32_0 : i32, i32
  }
  func.func @transform_3(%arg0: i32, %arg1: i32) -> (i32, i32, i32) {
    %c0_i32 = arith.constant 0 : i32
    %c0_i32_0 = arith.constant 0 : i32
    %c0_i32_1 = arith.constant 0 : i32
    return %arg1, %c0_i32, %c0_i32_0 : i32, i32, i32
  }
  func.func @transform_4(%arg0: i32, %arg1: i32) -> (i32, i32, i32) {
    %c0_i32 = arith.constant 0 : i32
    %c0_i32_0 = arith.constant 0 : i32
    %c0_i32_1 = arith.constant 0 : i32
    return %arg1, %c0_i32, %c0_i32_0 : i32, i32, i32
  }
  func.func @transform_5(%arg0: i32, %arg1: i32) -> (i32, i32, i32) {
    %c0_i32 = arith.constant 0 : i32
    %c0_i32_0 = arith.constant 0 : i32
    %c0_i32_1 = arith.constant 0 : i32
    return %arg1, %c0_i32, %c0_i32_0 : i32, i32, i32
  }
  func.func @transform_6(%arg0: i32, %arg1: i32) -> (i32, i32, i32) {
    %c0_i32 = arith.constant 0 : i32
    %c0_i32_0 = arith.constant 0 : i32
    %c0_i32_1 = arith.constant 0 : i32
    return %arg1, %c0_i32, %c0_i32_0 : i32, i32, i32
  }
  func.func @transform_7(%arg0: i32, %arg1: i32) -> (i32, i32, i32) {
    %c0_i32 = arith.constant 0 : i32
    %c0_i32_0 = arith.constant 0 : i32
    %c0_i32_1 = arith.constant 0 : i32
    return %arg1, %c0_i32, %c0_i32_0 : i32, i32, i32
  }
  func.func @transform_8(%arg0: i32, %arg1: i32) -> (i32, i32, i32) {
    %c0_i32 = arith.constant 0 : i32
    %c0_i32_0 = arith.constant 0 : i32
    %c0_i32_1 = arith.constant 0 : i32
    return %arg1, %c0_i32, %c0_i32_0 : i32, i32, i32
  }
  func.func @transform_9(%arg0: i32, %arg1: i32) -> (i32, i32, i32) {
    %c0_i32 = arith.constant 0 : i32
    %c0_i32_0 = arith.constant 0 : i32
    %c0_i32_1 = arith.constant 0 : i32
    return %arg1, %c0_i32, %c0_i32_0 : i32, i32, i32
  }
  func.func @transform_10(%arg0: i32, %arg1: i32) -> (i32, i32, i32) {
    %c0_i32 = arith.constant 0 : i32
    %c0_i32_0 = arith.constant 0 : i32
    %c0_i32_1 = arith.constant 0 : i32
    return %arg0, %c0_i32, %c0_i32_0 : i32, i32, i32
  }
}

</mosaic_0001>

<llo_original>
// kernel: tpu_custom_call.1
$region0: #{tpu_custom_call.1}
  #allocation0 [shape = 'u32[]', space=smem, size = 0x4, offset = 0x4, fixed_abs, tag = 'smem constant byte address 0x4 - core index']
  #allocation1 [shape = 'u32[144,128]{1,0:T(1,128)}', space=vmem, size = 0x12000, scoped, tag = 'internal scratch']
  #allocation2 [shape = 'f32[16,128]{1,0:T(8,128)}', space=vmem, size = 0x2000, scoped, tag = 'scratch operand']
  %s0 = inlined_call_operand.hbm [shape: f32[4,8,128], index: 0, kind: input, shape index: {}]
  %s1 = inlined_call_operand.vmem [shape: f32[4,1,8], index: 1, kind: input, shape index: {}]
  %s2 = inlined_call_operand.vmem [shape: f32[2,128], index: 2, kind: input, shape index: {}]
  %s3 = inlined_call_operand.hbm [shape: bf16[2,128,384], index: 3, kind: input, shape index: {}]
  %s4 = inlined_call_operand.vmem [shape: f32[2,1,384], index: 4, kind: input, shape index: {}]
  %s5 = inlined_call_operand.hbm [shape: bf16[2,128,128], index: 5, kind: input, shape index: {}]
  %s6 = inlined_call_operand.hbm [shape: bf16[2,128,512], index: 6, kind: input, shape index: {}]
  %s7 = inlined_call_operand.vmem [shape: f32[2,1,512], index: 7, kind: input, shape index: {}]
  %s8 = inlined_call_operand.hbm [shape: bf16[2,512,128], index: 8, kind: input, shape index: {}]
  %s9 = inlined_call_operand.vmem [shape: f32[2,6,128], index: 9, kind: input, shape index: {}]
  %s10 = inlined_call_operand.hbm [shape: f32[4,1,128], index: 10, kind: output, shape index: {}]
  %s11 = sld [smem:[#allocation0]]
  $region101: #{tpu_custom_call.1} parent=0
    _
  %s13 = ssub.s32 1, %s11
  %s14 = scalar_select 0, %s13, %s11
  $region1: #{tpu_custom_call.1} parent=0
    #allocation3 [shape = 'u8[16384]{0}', space=vmem, size = 0x4000, scoped, tag = 'input window, operand 0']
    #allocation4 [shape = 's32[2]{0}', space=sflag, size = 0x8, scoped, tag = 'scoped memory for tpu_custom_call.1']
    #allocation5 [shape = 's32[2]{0}', space=sflag, size = 0x8, scoped, tag = 'scoped memory for tpu_custom_call.1']
    #allocation6 [shape = 'u8[196608]{0}', space=vmem, size = 0x30000, scoped, tag = 'input window, operand 3']
    #allocation7 [shape = 's32[2]{0}', space=sflag, size = 0x8, scoped, tag = 'scoped memory for tpu_custom_call.1']
    #allocation8 [shape = 'u8[65536]{0}', space=vmem, size = 0x10000, scoped, tag = 'input window, operand 5']
    #allocation9 [shape = 'u8[262144]{0}', space=vmem, size = 0x40000, scoped, tag = 'input window, operand 6']
    #allocation10 [shape = 's32[2]{0}', space=sflag, size = 0x8, scoped, tag = 'scoped memory for tpu_custom_call.1']
    #allocation11 [shape = 'u8[262144]{0}', space=vmem, size = 0x40000, scoped, tag = 'input window, operand 8']
    #allocation12 [shape = 'u8[2048]{0}', space=vmem, size = 0x800, scoped, tag = 'output window, operand 0']
    %15 = vsyncpa [#allocation4], 0
    %s16 = scalar_lea.sflag [#allocation4], 1
    %17 = vsyncpa %s16, 0
    %18 = vsyncpa [#allocation7], 0
    %s19 = scalar_lea.sflag [#allocation7], 1
    %20 = vsyncpa %s19, 0
    %21 = vsyncpa [#allocation10], 0
    %s22 = scalar_lea.sflag [#allocation10], 1
    %23 = vsyncpa %s22, 0
    %24 = vsyncpa [#allocation5], 0
    %s25 = scalar_lea.sflag [#allocation5], 1
    %26 = vsyncpa %s25, 0
    loop: start=0, step=1, limit=6
    $region2: #{tpu_custom_call.1} parent=1 // loop_pre_header
      _
    $region3: #{tpu_custom_call.1} parent=1 // loop_header
      %s28 = sphi 0, %s32
      %p29 = scmp.ge.s32.totalorder %s28, 6
      %s35 = sphi 0, %s47
      %s36 = sphi 0, %s43
      %s37 = sphi 0, %s35
      %s38 = sphi 0, %s36
      %s39 = sphi 0, %s37
      %s40 = sphi 0, %s38
      %s50 = sphi 0, %s52
      %s53 = sphi 0, %s50
      %s54 = sphi 0, %s53
      %s70 = sphi 0, %s54
      %s76 = sphi 0, %s78
      %s79 = sphi 0, %s76
      %s80 = sphi 0, %s79
      %s96 = sphi 0, %s80
      %s100 = sphi 0, %s100
      %s102 = sphi 0, %s100
      %s103 = sphi 0, %s102
      %s117 = sphi 0, %s103
      %s123 = sphi 0, %s125
      %s126 = sphi 0, %s123
      %s127 = sphi 0, %s126
      %s143 = sphi 0, %s127
      %s149 = sphi 0, %s151
      %s152 = sphi 0, %s149
      %s153 = sphi 0, %s152
      %s169 = sphi 0, %s153
      %s175 = sphi 0, %s177
      %s178 = sphi 0, %s175
      %s179 = sphi 0, %s178
      %s195 = sphi 0, %s179
      %s201 = sphi 0, %s203
      %s204 = sphi 0, %s201
      %s205 = sphi 0, %s204
      %s221 = sphi 0, %s205
      %s227 = sphi 0, %s229
      %s230 = sphi 0, %s227
      %s231 = sphi 0, %s230
      %s247 = sphi 0, %s231
      %s253 = sphi 0, %s255
      %s256 = sphi 0, %s253
      %s257 = sphi 0, %s256
      %s273 = sphi 0, %s257
      %s279 = sphi 0, %s281
      %s282 = sphi 0, %s279
      %s283 = sphi 0, %s282
      %s299 = sphi 0, %s283
      %s305 = sphi 0, %s307
      %s308 = sphi 0, %s305
      %s309 = sphi 0, %s308
      %s325 = sphi 0, %s309
    $region4: #{tpu_custom_call.1} parent=1 // loop_header_branch
      %31 = sbr.rel (%p29) target = $region8
    $region5: #{tpu_custom_call.1} parent=1 // loop_body
      %s33 = ssub.s32 %s28, 1
      %s34 = ssub.s32 %s28, 2
      %s41 = sadd.s32 1, %s36
      %p42 = scmp.ge.s32.totalorder %s41, 2
      %s43 = scalar_select %p42, 0, %s41
      %s44 = sadd.s32 1, %s35
      %s45 = scalar_select %p42, %s44, %s35
      %p46 = scmp.ge.s32.totalorder %s45, 2
      %s47 = scalar_select %p46, 0, %s45
      %s48 = ssub.s32 %s35, %s47
      %p49 = scmp.eq.s32.totalorder %s48, 0
      %s51 = sadd.s32 %s50, 1
      %s52 = scalar_select %p49, %s50, %s51
      %p55 = pneg %p49
      %p56 = scmp.eq.s32.totalorder %s28, 3
      %p57 = por %p55, %p56
      %p58 = scmp.ne.s32.totalorder %s50, %s53
      %p59 = scmp.eq.s32.totalorder %s28, 0
      %p60 = por %p58, %p59
      %p61 = scmp.ne.s32.totalorder %s50, %s53
      %p62 = scmp.eq.s32.totalorder %s33, 3
      %p63 = por %p61, %p62
      %p64 = scmp.ne.s32.totalorder %s53, %s54
      %p65 = scmp.eq.s32.totalorder %s33, 0
      %p66 = por %p64, %p65
      %p67 = scmp.ne.s32.totalorder %s53, %s54
      %p68 = scmp.eq.s32.totalorder %s34, 3
      %p69 = por %p67, %p68
      %p71 = scmp.ne.s32.totalorder %s54, %s70
      %p72 = scmp.eq.s32.totalorder %s34, 0
      %p73 = por %p71, %p72
      %s74 = ssub.s32 %s35, %s47
      %p75 = scmp.eq.s32.totalorder %s74, 0
      %s77 = sadd.s32 %s76, 1
      %s78 = scalar_select %p75, %s76, %s77
      %p81 = pneg %p75
      %p82 = scmp.eq.s32.totalorder %s28, 3
      %p83 = por %p81, %p82
      %p84 = scmp.ne.s32.totalorder %s76, %s79
      %p85 = scmp.eq.s32.totalorder %s28, 0
      %p86 = por %p84, %p85
      %p87 = scmp.ne.s32.totalorder %s76, %s79
      %p88 = scmp.eq.s32.totalorder %s33, 3
      %p89 = por %p87, %p88
      %p90 = scmp.ne.s32.totalorder %s79, %s80
      %p91 = scmp.eq.s32.totalorder %s33, 0
      %p92 = por %p90, %p91
      %p93 = scmp.ne.s32.totalorder %s79, %s80
      %p94 = scmp.eq.s32.totalorder %s34, 3
      %p95 = por %p93, %p94
      %p97 = scmp.ne.s32.totalorder %s80, %s96
      %p98 = scmp.eq.s32.totalorder %s34, 0
      %p99 = por %p97, %p98
      %s101 = sadd.s32 %s100, 1
      %p104 = scmp.eq.s32.totalorder %s28, 3
      %p105 = scmp.ne.s32.totalorder %s100, %s102
      %p106 = scmp.eq.s32.totalorder %s28, 0
      %p107 = por %p105, %p106
      %p108 = scmp.ne.s32.totalorder %s100, %s102
      %p109 = scmp.eq.s32.totalorder %s33, 3
      %p110 = por %p108, %p109
      %p111 = scmp.ne.s32.totalorder %s102, %s103
      %p112 = scmp.eq.s32.totalorder %s33, 0
      %p113 = por %p111, %p112
      %p114 = scmp.ne.s32.totalorder %s102, %s103
      %p115 = scmp.eq.s32.totalorder %s34, 3
      %p116 = por %p114, %p115
      %p118 = scmp.ne.s32.totalorder %s103, %s117
      %p119 = scmp.eq.s32.totalorder %s34, 0
      %p120 = por %p118, %p119
      %s121 = ssub.s32 %s36, %s43
      %p122 = scmp.eq.s32.totalorder %s121, 0
      %s124 = sadd.s32 %s123, 1
      %s125 = scalar_select %p122, %s123, %s124
      %p128 = pneg %p122
      %p129 = scmp.eq.s32.totalorder %s28, 3
      %p130 = por %p128, %p129
      %p131 = scmp.ne.s32.totalorder %s123, %s126
      %p132 = scmp.eq.s32.totalorder %s28, 0
      %p133 = por %p131, %p132
      %p134 = scmp.ne.s32.totalorder %s123, %s126
      %p135 = scmp.eq.s32.totalorder %s33, 3
      %p136 = por %p134, %p135
      %p137 = scmp.ne.s32.totalorder %s126, %s127
      %p138 = scmp.eq.s32.totalorder %s33, 0
      %p139 = por %p137, %p138
      %p140 = scmp.ne.s32.totalorder %s126, %s127
      %p141 = scmp.eq.s32.totalorder %s34, 3
      %p142 = por %p140, %p141
      %p144 = scmp.ne.s32.totalorder %s127, %s143
      %p145 = scmp.eq.s32.totalorder %s34, 0
      %p146 = por %p144, %p145
      %s147 = ssub.s32 %s36, %s43
      %p148 = scmp.eq.s32.totalorder %s147, 0
      %s150 = sadd.s32 %s149, 1
      %s151 = scalar_select %p148, %s149, %s150
      %p154 = pneg %p148
      %p155 = scmp.eq.s32.totalorder %s28, 3
      %p156 = por %p154, %p155
      %p157 = scmp.ne.s32.totalorder %s149, %s152
      %p158 = scmp.eq.s32.totalorder %s28, 0
      %p159 = por %p157, %p158
      %p160 = scmp.ne.s32.totalorder %s149, %s152
      %p161 = scmp.eq.s32.totalorder %s33, 3
      %p162 = por %p160, %p161
      %p163 = scmp.ne.s32.totalorder %s152, %s153
      %p164 = scmp.eq.s32.totalorder %s33, 0
      %p165 = por %p163, %p164
      %p166 = scmp.ne.s32.totalorder %s152, %s153
      %p167 = scmp.eq.s32.totalorder %s34, 3
      %p168 = por %p166, %p167
      %p170 = scmp.ne.s32.totalorder %s153, %s169
      %p171 = scmp.eq.s32.totalorder %s34, 0
      %p172 = por %p170, %p171
      %s173 = ssub.s32 %s36, %s43
      %p174 = scmp.eq.s32.totalorder %s173, 0
      %s176 = sadd.s32 %s175, 1
      %s177 = scalar_select %p174, %s175, %s176
      %p180 = pneg %p174
      %p181 = scmp.eq.s32.totalorder %s28, 3
      %p182 = por %p180, %p181
      %p183 = scmp.ne.s32.totalorder %s175, %s178
      %p184 = scmp.eq.s32.totalorder %s28, 0
      %p185 = por %p183, %p184
      %p186 = scmp.ne.s32.totalorder %s175, %s178
      %p187 = scmp.eq.s32.totalorder %s33, 3
      %p188 = por %p186, %p187
      %p189 = scmp.ne.s32.totalorder %s178, %s179
      %p190 = scmp.eq.s32.totalorder %s33, 0
      %p191 = por %p189, %p190
      %p192 = scmp.ne.s32.totalorder %s178, %s179
      %p193 = scmp.eq.s32.totalorder %s34, 3
      %p194 = por %p192, %p193
      %p196 = scmp.ne.s32.totalorder %s179, %s195
      %p197 = scmp.eq.s32.totalorder %s34, 0
      %p198 = por %p196, %p197
      %s199 = ssub.s32 %s36, %s43
      %p200 = scmp.eq.s32.totalorder %s199, 0
      %s202 = sadd.s32 %s201, 1
      %s203 = scalar_select %p200, %s201, %s202
      %p206 = pneg %p200
      %p207 = scmp.eq.s32.totalorder %s28, 3
      %p208 = por %p206, %p207
      %p209 = scmp.ne.s32.totalorder %s201, %s204
      %p210 = scmp.eq.s32.totalorder %s28, 0
      %p211 = por %p209, %p210
      %p212 = scmp.ne.s32.totalorder %s201, %s204
      %p213 = scmp.eq.s32.totalorder %s33, 3
      %p214 = por %p212, %p213
      %p215 = scmp.ne.s32.totalorder %s204, %s205
      %p216 = scmp.eq.s32.totalorder %s33, 0
      %p217 = por %p215, %p216
      %p218 = scmp.ne.s32.totalorder %s204, %s205
      %p219 = scmp.eq.s32.totalorder %s34, 3
      %p220 = por %p218, %p219
      %p222 = scmp.ne.s32.totalorder %s205, %s221
      %p223 = scmp.eq.s32.totalorder %s34, 0
      %p224 = por %p222, %p223
      %s225 = ssub.s32 %s36, %s43
      %p226 = scmp.eq.s32.totalorder %s225, 0
      %s228 = sadd.s32 %s227, 1
      %s229 = scalar_select %p226, %s227, %s228
      %p232 = pneg %p226
      %p233 = scmp.eq.s32.totalorder %s28, 3
      %p234 = por %p232, %p233
      %p235 = scmp.ne.s32.totalorder %s227, %s230
      %p236 = scmp.eq.s32.totalorder %s28, 0
      %p237 = por %p235, %p236
      %p238 = scmp.ne.s32.totalorder %s227, %s230
      %p239 = scmp.eq.s32.totalorder %s33, 3
      %p240 = por %p238, %p239
      %p241 = scmp.ne.s32.totalorder %s230, %s231
      %p242 = scmp.eq.s32.totalorder %s33, 0
      %p243 = por %p241, %p242
      %p244 = scmp.ne.s32.totalorder %s230, %s231
      %p245 = scmp.eq.s32.totalorder %s34, 3
      %p246 = por %p244, %p245
      %p248 = scmp.ne.s32.totalorder %s231, %s247
      %p249 = scmp.eq.s32.totalorder %s34, 0
      %p250 = por %p248, %p249
      %s251 = ssub.s32 %s36, %s43
      %p252 = scmp.eq.s32.totalorder %s251, 0
      %s254 = sadd.s32 %s253, 1
      %s255 = scalar_select %p252, %s253, %s254
      %p258 = pneg %p252
      %p259 = scmp.eq.s32.totalorder %s28, 3
      %p260 = por %p258, %p259
      %p261 = scmp.ne.s32.totalorder %s253, %s256
      %p262 = scmp.eq.s32.totalorder %s28, 0
      %p263 = por %p261, %p262
      %p264 = scmp.ne.s32.totalorder %s253, %s256
      %p265 = scmp.eq.s32.totalorder %s33, 3
      %p266 = por %p264, %p265
      %p267 = scmp.ne.s32.totalorder %s256, %s257
      %p268 = scmp.eq.s32.totalorder %s33, 0
      %p269 = por %p267, %p268
      %p270 = scmp.ne.s32.totalorder %s256, %s257
      %p271 = scmp.eq.s32.totalorder %s34, 3
      %p272 = por %p270, %p271
      %p274 = scmp.ne.s32.totalorder %s257, %s273
      %p275 = scmp.eq.s32.totalorder %s34, 0
      %p276 = por %p274, %p275
      %s277 = ssub.s32 %s36, %s43
      %p278 = scmp.eq.s32.totalorder %s277, 0
      %s280 = sadd.s32 %s279, 1
      %s281 = scalar_select %p278, %s279, %s280
      %p284 = pneg %p278
      %p285 = scmp.eq.s32.totalorder %s28, 3
      %p286 = por %p284, %p285
      %p287 = scmp.ne.s32.totalorder %s279, %s282
      %p288 = scmp.eq.s32.totalorder %s28, 0
      %p289 = por %p287, %p288
      %p290 = scmp.ne.s32.totalorder %s279, %s282
      %p291 = scmp.eq.s32.totalorder %s33, 3
      %p292 = por %p290, %p291
      %p293 = scmp.ne.s32.totalorder %s282, %s283
      %p294 = scmp.eq.s32.totalorder %s33, 0
      %p295 = por %p293, %p294
      %p296 = scmp.ne.s32.totalorder %s282, %s283
      %p297 = scmp.eq.s32.totalorder %s34, 3
      %p298 = por %p296, %p297
      %p300 = scmp.ne.s32.totalorder %s283, %s299
      %p301 = scmp.eq.s32.totalorder %s34, 0
      %p302 = por %p300, %p301
      %s303 = ssub.s32 %s35, %s47
      %p304 = scmp.eq.s32.totalorder %s303, 0
      %s306 = sadd.s32 %s305, 1
      %s307 = scalar_select %p304, %s305, %s306
      %p310 = pneg %p304
      %p311 = scmp.eq.s32.totalorder %s28, 3
      %p312 = por %p310, %p311
      %p313 = scmp.ne.s32.totalorder %s305, %s308
      %p314 = scmp.eq.s32.totalorder %s28, 0
      %p315 = por %p313, %p314
      %p316 = scmp.ne.s32.totalorder %s305, %s308
      %p317 = scmp.eq.s32.totalorder %s33, 3
      %p318 = por %p316, %p317
      %p319 = scmp.ne.s32.totalorder %s308, %s309
      %p320 = scmp.eq.s32.totalorder %s33, 0
      %p321 = por %p319, %p320
      %p322 = scmp.ne.s32.totalorder %s308, %s309
      %p323 = scmp.eq.s32.totalorder %s34, 3
      %p324 = por %p322, %p323
      %p326 = scmp.ne.s32.totalorder %s309, %s325
      %p327 = scmp.eq.s32.totalorder %s34, 0
      %p328 = por %p326, %p327
      %p329 = scmp.le.s32.totalorder 1, %s28
      %p330 = scmp.lt.s32.totalorder %s28, 5
      %p331 = pnand %p329, %p330
      %p332 = pneg %p331
      // Predicated region
      $region9: #{tpu_custom_call.1} parent=5 // pred_check
        _
      $region10: #{tpu_custom_call.1} parent=5 // pred_check_branch
        %334 = sbr.rel (%p331) target = $region12
      $region11: #{tpu_custom_call.1} parent=5 // pred_region
        %s335 = ssub.s32 %s28, 1
        // Predicated region
        $region13: #{tpu_custom_call.1} parent=11 // pred_check
          %p336 = pneg %p113
        $region14: #{tpu_custom_call.1} parent=11 // pred_check_branch
          %338 = sbr.rel (%p336) target = $region16
        $region15: #{tpu_custom_call.1} parent=11 // pred_region
          _
        $region16: #{tpu_custom_call.1} parent=11 // pred_fallthru
          _
      $region12: #{tpu_custom_call.1} parent=5 // pred_fallthru
        _
      %p339 = scmp.lt.s32.totalorder %s28, 4
      // Predicated region
      $region17: #{tpu_custom_call.1} parent=5 // pred_check
        %p340 = pneg %p339
      $region18: #{tpu_custom_call.1} parent=5 // pred_check_branch
        %342 = sbr.rel (%p340) target = $region20
      $region19: #{tpu_custom_call.1} parent=5 // pred_region
        // Predicated region
        $region21: #{tpu_custom_call.1} parent=19 // pred_check
          %p343 = pneg %p60
        $region22: #{tpu_custom_call.1} parent=19 // pred_check_branch
          %345 = sbr.rel (%p343) target = $region24
        $region23: #{tpu_custom_call.1} parent=19 // pred_region
          %s346 = sand.u32 %s50, 1
          %s347 = scalar_lea.sflag [#allocation4], %s346
          %s348 = sand.u32 %s50, 1
          %s349 = smul.addr %s348, 16
          %s350 = scalar_lea.vmem [#allocation3], %s349
          %s351 = smul.u32 2, %s35
          %s353 = ssub.s32 256, 256
          %354 = vsyncadd %s347, %s353
          %s355 = smul.addr %s351, 128
          %s356 = scalar_lea.hbm %s0, %s355
          %s357 = sshll.u32 %s350, 4
          %s358 = int_to_ptr.vmem [resolvable:$true] %s357
          %363 = dma.hbm_to_vmem [thread:$0]  %s356, 256, %s358, %s347, 128, 128, 8
        $region24: #{tpu_custom_call.1} parent=19 // pred_fallthru
          _
        // Predicated region
        $region25: #{tpu_custom_call.1} parent=19 // pred_check
          %p364 = pneg %p86
        $region26: #{tpu_custom_call.1} parent=19 // pred_check_branch
          %366 = sbr.rel (%p364) target = $region28
        $region27: #{tpu_custom_call.1} parent=19 // pred_region
          %s367 = smul.u32 2, %s35
          %p368 = scmp.lt.s32.totalorder %s367, 3
          %s369 = scalar_select %p368, %s367, 3
          %s370 = scalar_lea.vmem %s1, %s369
          %s371 = smul.u32 2, %s35
        $region28: #{tpu_custom_call.1} parent=19 // pred_fallthru
          _
        // Predicated region
        $region29: #{tpu_custom_call.1} parent=19 // pred_check
          %p372 = pneg %p133
        $region30: #{tpu_custom_call.1} parent=19 // pred_check_branch
          %374 = sbr.rel (%p372) target = $region32
        $region31: #{tpu_custom_call.1} parent=19 // pred_region
          %s375 = sand.u32 %s28, 1
          %s376 = scalar_lea.sflag [#allocation7], %s375
          %s377 = sand.u32 %s123, 1
          %s378 = smul.addr %s377, 192
          %s379 = scalar_lea.vmem [#allocation6], %s378
          %s381 = ssub.s32 3072, 3072
          %382 = vsyncadd %s376, %s381
          %s383 = smul.addr %s36, 48
          %s384 = smul.addr %s383, 64
          %s385 = scalar_lea.hbm %s3, %s384
          %s386 = sshll.u32 %s379, 4
          %s387 = int_to_ptr.vmem [resolvable:$true] %s386
          %392 = dma.hbm_to_vmem [thread:$0]  %s385, 3072, %s387, %s376, 192, 192, 12
        $region32: #{tpu_custom_call.1} parent=19 // pred_fallthru
          _
        // Predicated region
        $region33: #{tpu_custom_call.1} parent=19 // pred_check
          %p393 = pneg %p159
        $region34: #{tpu_custom_call.1} parent=19 // pred_check_branch
          %395 = sbr.rel (%p393) target = $region36
        $region35: #{tpu_custom_call.1} parent=19 // pred_region
          %p396 = scmp.lt.s32.totalorder %s36, 1
          %s397 = scalar_select %p396, %s36, 1
          %s398 = smul.addr %s397, 3
          %s399 = scalar_lea.vmem %s4, %s398
        $region36: #{tpu_custom_call.1} parent=19 // pred_fallthru
          _
        // Predicated region
        $region37: #{tpu_custom_call.1} parent=19 // pred_check
          %p400 = pneg %p185
        $region38: #{tpu_custom_call.1} parent=19 // pred_check_branch
          %402 = sbr.rel (%p400) target = $region40
        $region39: #{tpu_custom_call.1} parent=19 // pred_region
          %s403 = sand.u32 %s28, 1
          %s404 = scalar_lea.sflag [#allocation7], %s403
          %s405 = sand.u32 %s175, 1
          %s406 = smul.addr %s405, 64
          %s407 = scalar_lea.vmem [#allocation8], %s406
          %s409 = ssub.s32 1024, 1024
          %410 = vsyncadd %s404, %s409
          %s411 = smul.addr %s36, 16
          %s412 = smul.addr %s411, 64
          %s413 = scalar_lea.hbm %s5, %s412
          %s414 = sshll.u32 %s407, 4
          %s415 = int_to_ptr.vmem [resolvable:$true] %s414
          %420 = dma.hbm_to_vmem [thread:$0]  %s413, 1024, %s415, %s404, 64, 64, 4
        $region40: #{tpu_custom_call.1} parent=19 // pred_fallthru
          _
        // Predicated region
        $region41: #{tpu_custom_call.1} parent=19 // pred_check
          %p421 = pneg %p211
        $region42: #{tpu_custom_call.1} parent=19 // pred_check_branch
          %423 = sbr.rel (%p421) target = $region44
        $region43: #{tpu_custom_call.1} parent=19 // pred_region
          %s424 = sand.u32 %s28, 1
          %s425 = scalar_lea.sflag [#allocation10], %s424
          %s426 = sand.u32 %s201, 1
          %s427 = smul.addr %s426, 256
          %s428 = scalar_lea.vmem [#allocation9], %s427
          %s430 = ssub.s32 4096, 4096
          %431 = vsyncadd %s425, %s430
          %s432 = smul.addr %s36, 64
          %s433 = smul.addr %s432, 64
          %s434 = scalar_lea.hbm %s6, %s433
          %s435 = sshll.u32 %s428, 4
          %s436 = int_to_ptr.vmem [resolvable:$true] %s435
          %441 = dma.hbm_to_vmem [thread:$0]  %s434, 4096, %s436, %s425, 256, 256, 16
        $region44: #{tpu_custom_call.1} parent=19 // pred_fallthru
          _
        // Predicated region
        $region45: #{tpu_custom_call.1} parent=19 // pred_check
          %p442 = pneg %p237
        $region46: #{tpu_custom_call.1} parent=19 // pred_check_branch
          %444 = sbr.rel (%p442) target = $region48
        $region47: #{tpu_custom_call.1} parent=19 // pred_region
          %p445 = scmp.lt.s32.totalorder %s36, 1
          %s446 = scalar_select %p445, %s36, 1
          %s447 = smul.addr %s446, 4
          %s448 = scalar_lea.vmem %s7, %s447
        $region48: #{tpu_custom_call.1} parent=19 // pred_fallthru
          _
        // Predicated region
        $region49: #{tpu_custom_call.1} parent=19 // pred_check
          %p449 = pneg %p263
        $region50: #{tpu_custom_call.1} parent=19 // pred_check_branch
          %451 = sbr.rel (%p449) target = $region52
        $region51: #{tpu_custom_call.1} parent=19 // pred_region
          %s452 = sand.u32 %s28, 1
          %s453 = scalar_lea.sflag [#allocation10], %s452
          %s454 = sand.u32 %s253, 1
          %s455 = smul.addr %s454, 256
          %s456 = scalar_lea.vmem [#allocation11], %s455
          %s458 = ssub.s32 4096, 4096
          %459 = vsyncadd %s453, %s458
          %s460 = smul.addr %s36, 64
          %s461 = smul.addr %s460, 64
          %s462 = scalar_lea.hbm %s8, %s461
          %s463 = sshll.u32 %s456, 4
          %s464 = int_to_ptr.vmem [resolvable:$true] %s463
          %469 = dma.hbm_to_vmem [thread:$0]  %s462, 4096, %s464, %s453, 64, 64, 4
        $region52: #{tpu_custom_call.1} parent=19 // pred_fallthru
          _
        // Predicated region
        $region53: #{tpu_custom_call.1} parent=19 // pred_check
          %p470 = pneg %p289
        $region54: #{tpu_custom_call.1} parent=19 // pred_check_branch
          %472 = sbr.rel (%p470) target = $region56
        $region55: #{tpu_custom_call.1} parent=19 // pred_region
          %p473 = scmp.lt.s32.totalorder %s36, 1
          %s474 = scalar_select %p473, %s36, 1
          %s475 = smul.addr %s474, 8
          %s476 = scalar_lea.vmem %s9, %s475
        $region56: #{tpu_custom_call.1} parent=19 // pred_fallthru
          _
      $region20: #{tpu_custom_call.1} parent=5 // pred_fallthru
        _
      %p477 = scmp.le.s32.totalorder 1, %s28
      %p478 = scmp.lt.s32.totalorder %s28, 5
      %p479 = pnand %p477, %p478
      %p480 = pneg %p479
      // Predicated region
      $region57: #{tpu_custom_call.1} parent=5 // pred_check
        _
      $region58: #{tpu_custom_call.1} parent=5 // pred_check_branch
        %482 = sbr.rel (%p479) target = $region60
      $region59: #{tpu_custom_call.1} parent=5 // pred_region
        %s483 = ssub.s32 %s28, 1
        %s484 = sand.u32 %s53, 1
        %s485 = scalar_lea.sflag [#allocation4], %s484
        %s486 = sand.u32 %s53, 1
        %s487 = smul.addr %s486, 16
        %s488 = scalar_lea.vmem [#allocation3], %s487
        // Predicated region
        $region61: #{tpu_custom_call.1} parent=59 // pred_check
          %p489 = pneg %p66
        $region62: #{tpu_custom_call.1} parent=59 // pred_check_branch
          %491 = sbr.rel (%p489) target = $region64
        $region63: #{tpu_custom_call.1} parent=59 // pred_region
          %492 = dma.done %s485, 256
        $region64: #{tpu_custom_call.1} parent=59 // pred_fallthru
          _
        %s493 = sand.u32 %s33, 1
        %s494 = scalar_lea.sflag [#allocation7], %s493
        %s495 = sand.u32 %s126, 1
        %s496 = smul.addr %s495, 192
        %s497 = scalar_lea.vmem [#allocation6], %s496
        // Predicated region
        $region65: #{tpu_custom_call.1} parent=59 // pred_check
          %p498 = pneg %p139
        $region66: #{tpu_custom_call.1} parent=59 // pred_check_branch
          %500 = sbr.rel (%p498) target = $region68
        $region67: #{tpu_custom_call.1} parent=59 // pred_region
          %501 = dma.done %s494, 3072
        $region68: #{tpu_custom_call.1} parent=59 // pred_fallthru
          _
        %s502 = sand.u32 %s33, 1
        %s503 = scalar_lea.sflag [#allocation7], %s502
        %s504 = sand.u32 %s178, 1
        %s505 = smul.addr %s504, 64
        %s506 = scalar_lea.vmem [#allocation8], %s505
        // Predicated region
        $region69: #{tpu_custom_call.1} parent=59 // pred_check
          %p507 = pneg %p191
        $region70: #{tpu_custom_call.1} parent=59 // pred_check_branch
          %509 = sbr.rel (%p507) target = $region72
        $region71: #{tpu_custom_call.1} parent=59 // pred_region
          %510 = dma.done %s503, 1024
        $region72: #{tpu_custom_call.1} parent=59 // pred_fallthru
          _
        %s511 = sand.u32 %s33, 1
        %s512 = scalar_lea.sflag [#allocation10], %s511
        %s513 = sand.u32 %s204, 1
        %s514 = smul.addr %s513, 256
        %s515 = scalar_lea.vmem [#allocation9], %s514
        // Predicated region
        $region73: #{tpu_custom_call.1} parent=59 // pred_check
          %p516 = pneg %p217
        $region74: #{tpu_custom_call.1} parent=59 // pred_check_branch
          %518 = sbr.rel (%p516) target = $region76
        $region75: #{tpu_custom_call.1} parent=59 // pred_region
          %519 = dma.done %s512, 4096
        $region76: #{tpu_custom_call.1} parent=59 // pred_fallthru
          _
        %s520 = sand.u32 %s33, 1
        %s521 = scalar_lea.sflag [#allocation10], %s520
        %s522 = sand.u32 %s256, 1
        %s523 = smul.addr %s522, 256
        %s524 = scalar_lea.vmem [#allocation11], %s523
        // Predicated region
        $region77: #{tpu_custom_call.1} parent=59 // pred_check
          %p525 = pneg %p269
        $region78: #{tpu_custom_call.1} parent=59 // pred_check_branch
          %527 = sbr.rel (%p525) target = $region80
        $region79: #{tpu_custom_call.1} parent=59 // pred_region
          %528 = dma.done %s521, 4096
        $region80: #{tpu_custom_call.1} parent=59 // pred_fallthru
          _
        %s529 = sand.u32 %s53, 1
        %s530 = scalar_lea.sflag [#allocation4], %s529
        %s531 = sand.u32 %s53, 1
        %s532 = smul.addr %s531, 16
        %s533 = scalar_lea.vmem [#allocation3], %s532
        %p534 = pneg %p66
        %p535 = pneg %p63
        %s536 = smul.u32 2, %s37
        %p537 = scmp.lt.s32.totalorder %s536, 3
        %s538 = scalar_select %p537, %s536, 3
        %s539 = scalar_lea.vmem %s1, %s538
        %p540 = pneg %p92
        %p541 = pneg %p89
        %p542 = pneg %p113
        %p543 = pneg %p110
        %s544 = sand.u32 %s33, 1
        %s545 = scalar_lea.sflag [#allocation7], %s544
        %s546 = sand.u32 %s126, 1
        %s547 = smul.addr %s546, 192
        %s548 = scalar_lea.vmem [#allocation6], %s547
        %p549 = pneg %p139
        %p550 = pneg %p136
        %p551 = scmp.lt.s32.totalorder %s38, 1
        %s552 = scalar_select %p551, %s38, 1
        %s553 = smul.addr %s552, 3
        %s554 = scalar_lea.vmem %s4, %s553
        %p555 = pneg %p165
        %p556 = pneg %p162
        %s557 = sand.u32 %s33, 1
        %s558 = scalar_lea.sflag [#allocation7], %s557
        %s559 = sand.u32 %s178, 1
        %s560 = smul.addr %s559, 64
        %s561 = scalar_lea.vmem [#allocation8], %s560
        %p562 = pneg %p191
        %p563 = pneg %p188
        %s564 = sand.u32 %s33, 1
        %s565 = scalar_lea.sflag [#allocation10], %s564
        %s566 = sand.u32 %s204, 1
        %s567 = smul.addr %s566, 256
        %s568 = scalar_lea.vmem [#allocation9], %s567
        %p569 = pneg %p217
        %p570 = pneg %p214
        %p571 = scmp.lt.s32.totalorder %s38, 1
        %s572 = scalar_select %p571, %s38, 1
        %s573 = smul.addr %s572, 4
        %s574 = scalar_lea.vmem %s7, %s573
        %p575 = pneg %p243
        %p576 = pneg %p240
        %s577 = sand.u32 %s33, 1
        %s578 = scalar_lea.sflag [#allocation10], %s577
        %s579 = sand.u32 %s256, 1
        %s580 = smul.addr %s579, 256
        %s581 = scalar_lea.vmem [#allocation11], %s580
        %p582 = pneg %p269
        %p583 = pneg %p266
        %p584 = scmp.lt.s32.totalorder %s38, 1
        %s585 = scalar_select %p584, %s38, 1
        %s586 = smul.addr %s585, 8
        %s587 = scalar_lea.vmem %s9, %s586
        %p588 = pneg %p295
        %p589 = pneg %p292
        %p590 = pneg %p321
        %p591 = pneg %p318
        %s592 = sand.u32 %s308, 1
        %s593 = scalar_lea.sflag [#allocation5], %s592
        %s594 = sand.u32 %s308, 1
        %s595 = smul.addr %s594, 2
        %s596 = scalar_lea.vmem [#allocation12], %s595
        %s597 = smul.u32 2, %s37
        %s598 = smul.u32 2, %s37
        %p599 = scmp.lt.s32.totalorder %s598, 3
        %s600 = scalar_select %p599, %s598, 3
        %s601 = scalar_lea.vmem %s1, %s600
        %s602 = smul.u32 2, %s37
        %p603 = scmp.lt.s32.totalorder %s38, 1
        %s604 = scalar_select %p603, %s38, 1
        %s605 = smul.addr %s604, 3
        %s606 = scalar_lea.vmem %s4, %s605
        %p607 = scmp.lt.s32.totalorder %s38, 1
        %s608 = scalar_select %p607, %s38, 1
        %s609 = smul.addr %s608, 4
        %s610 = scalar_lea.vmem %s7, %s609
        %p611 = scmp.lt.s32.totalorder %s38, 1
        %s612 = scalar_select %p611, %s38, 1
        %s613 = smul.addr %s612, 8
        %s614 = scalar_lea.vmem %s9, %s613
        %s615 = smul.u32 2, %s37
        %p617 = scmp.eq.s32.totalorder %s38, 0
        // Predicated region
        $region81: #{tpu_custom_call.1} parent=59 // pred_check
          %p618 = pneg %p617
        $region82: #{tpu_custom_call.1} parent=59 // pred_check_branch
          %620 = sbr.rel (%p618) target = $region84
        $region83: #{tpu_custom_call.1} parent=59 // pred_region
          %v621 = vld [vmem:[%s488] sm:$0xff]
          %v622 = vld [vmem:[%s488 + $0x8] sm:$0xff]
          %v623 = vld [vmem:[%s2] sm:$0x1]
          %v624 = vld [vmem:[%s2 + $0x1] sm:$0x1]
          %625 = vadd.xlane.f32.xlu0 %v621
          %v626 = vpop.xlane.xlu0 %625
          %627 = vadd.xlane.f32.xlu0 %v622
          %v628 = vpop.xlane.xlu0 %627
          %v629 = vrcp.pop 128.0
          %v630 = vmul.f32 %v626, %v629
          %v631 = vmul.f32 %v628, %v629
          %v632 = vsub.f32 %v621, %v630
          %v633 = vsub.f32 %v622, %v631
          %v634 = vmul.f32 %v632, %v632
          %v635 = vmul.f32 %v633, %v633
          %636 = vadd.xlane.f32.xlu0 %v634
          %v637 = vpop.xlane.xlu0 %636
          %638 = vadd.xlane.f32.xlu0 %v635
          %v639 = vpop.xlane.xlu0 %638
          %v640 = vmul.f32 %v637, %v629
          %v641 = vmul.f32 %v639, %v629
          %v642 = vadd.f32 %v640, 1e-12
          %v643 = vadd.f32 %v641, 1e-12
          %v644 = vrsqrt.pop %v642
          %v645 = vrsqrt.pop %v643
          %v646 = vmul.f32 %v632, %v644
          %v647 = vmul.f32 %v633, %v645
          %v648 = vlaneseq
          %v649 = vshrl.u32 %v648, 7
          %v650 = vsub.s32 0, %v649
          %v651 = vrot.slane %v623, %v650
          %v652 = vmul.f32 %v646, %v651
          %v653 = vmul.f32 %v647, %v651
          %v654 = vlaneseq
          %v655 = vshrl.u32 %v654, 7
          %v656 = vsub.s32 0, %v655
          %v657 = vrot.slane %v624, %v656
          %v658 = vadd.f32 %v652, %v657
          %v659 = vadd.f32 %v653, %v657
          %660 = vst [vmem:[#allocation2] sm:$0xff] %v658
          %661 = vst [vmem:[#allocation2 + $0x8] sm:$0xff] %v659
        $region84: #{tpu_custom_call.1} parent=59 // pred_fallthru
          _
        %v662 = vld [vmem:[#allocation2] sm:$0xff]
        %v663 = vld [vmem:[#allocation2 + $0x8] sm:$0xff]
        %v664 = vpack.c.bf16 %v663, %v662
        %v665 = vld [vmem:[%s601] sm:$0x1]
        %v666 = vld [vmem:[%s601 + $0x1] sm:$0x1]
        %v667 = vld [vmem:[%s497] sm:$0xff]
        %v668 = vld [vmem:[%s497 + $0x8] sm:$0xf]
        %v669 = vld [vmem:[%s497 + $0xc] sm:$0xff]
        %v670 = vld [vmem:[%s497 + $0x14] sm:$0xf]
        %v671 = vld [vmem:[%s497 + $0x18] sm:$0xff]
        %v672 = vld [vmem:[%s497 + $0x20] sm:$0xf]
        %v673 = vld [vmem:[%s497 + $0x24] sm:$0xff]
        %v674 = vld [vmem:[%s497 + $0x2c] sm:$0xf]
        %v675 = vld [vmem:[%s497 + $0x30] sm:$0xff]
        %v676 = vld [vmem:[%s497 + $0x38] sm:$0xf]
        %v677 = vld [vmem:[%s497 + $0x3c] sm:$0xff]
        %v678 = vld [vmem:[%s497 + $0x44] sm:$0xf]
        %v679 = vld [vmem:[%s497 + $0x48] sm:$0xff]
        %v680 = vld [vmem:[%s497 + $0x50] sm:$0xf]
        %v681 = vld [vmem:[%s497 + $0x54] sm:$0xff]
        %v682 = vld [vmem:[%s497 + $0x5c] sm:$0xf]
        %v683 = vld [vmem:[%s497 + $0x60] sm:$0xff]
        %v684 = vld [vmem:[%s497 + $0x68] sm:$0xf]
        %v685 = vld [vmem:[%s497 + $0x6c] sm:$0xff]
        %v686 = vld [vmem:[%s497 + $0x74] sm:$0xf]
        %v687 = vld [vmem:[%s497 + $0x78] sm:$0xff]
        %v688 = vld [vmem:[%s497 + $0x80] sm:$0xf]
        %v689 = vld [vmem:[%s497 + $0x84] sm:$0xff]
        %v690 = vld [vmem:[%s497 + $0x8c] sm:$0xf]
        %v691 = vld [vmem:[%s497 + $0x90] sm:$0xff]
        %v692 = vld [vmem:[%s497 + $0x98] sm:$0xf]
        %v693 = vld [vmem:[%s497 + $0x9c] sm:$0xff]
        %v694 = vld [vmem:[%s497 + $0xa4] sm:$0xf]
        %v695 = vld [vmem:[%s497 + $0xa8] sm:$0xff]
        %v696 = vld [vmem:[%s497 + $0xb0] sm:$0xf]
        %v697 = vld [vmem:[%s497 + $0xb4] sm:$0xff]
        %v698 = vld [vmem:[%s497 + $0xbc] sm:$0xf]
        %v699 = vld [vmem:[%s606] sm:$0x7]
        %v701 = vlaneseq
        %v702 = vshrl.u32 %v701, 7
        %v703 = vsub.s32 0, %v702
        %v704 = vrot.slane %v699, %v703
        %v705 = vlaneseq
        %v706 = vshrl.u32 %v705, 7
        %v707 = vsub.s32 1, %v706
        %v708 = vrot.slane %v699, %v707
        %v709 = vlaneseq
        %v710 = vshrl.u32 %v709, 7
        %v711 = vsub.s32 2, %v710
        %v712 = vrot.slane %v699, %v711
        %v748 = vunpack.c.l.b16 %v667
        %v749 = vunpack.c.h.b16 %v667
        %v750 = vunpack.c.l.b16 %v668
        %v751 = vunpack.c.l.b16 %v669
        %v752 = vunpack.c.h.b16 %v669
        %v753 = vunpack.c.l.b16 %v670
        %v754 = vunpack.c.l.b16 %v671
        %v755 = vunpack.c.h.b16 %v671
        %v756 = vunpack.c.l.b16 %v672
        %v757 = vunpack.c.l.b16 %v673
        %v758 = vunpack.c.h.b16 %v673
        %v759 = vunpack.c.l.b16 %v674
        %v760 = vunpack.c.l.b16 %v675
        %v761 = vunpack.c.h.b16 %v675
        %v762 = vunpack.c.l.b16 %v676
        %v763 = vunpack.c.l.b16 %v677
        %v764 = vunpack.c.h.b16 %v677
        %v765 = vunpack.c.l.b16 %v678
        %v766 = vunpack.c.l.b16 %v679
        %v767 = vunpack.c.h.b16 %v679
        %v768 = vunpack.c.l.b16 %v680
        %v769 = vunpack.c.l.b16 %v681
        %v770 = vunpack.c.h.b16 %v681
        %v771 = vunpack.c.l.b16 %v682
        %v772 = vunpack.c.l.b16 %v683
        %v773 = vunpack.c.h.b16 %v683
        %v774 = vunpack.c.l.b16 %v684
        %v775 = vunpack.c.l.b16 %v685
        %v776 = vunpack.c.h.b16 %v685
        %v777 = vunpack.c.l.b16 %v686
        %v778 = vunpack.c.l.b16 %v687
        %v779 = vunpack.c.h.b16 %v687
        %v780 = vunpack.c.l.b16 %v688
        %v781 = vunpack.c.l.b16 %v689
        %v782 = vunpack.c.h.b16 %v689
        %v783 = vunpack.c.l.b16 %v690
        %v784 = vunpack.c.l.b16 %v691
        %v785 = vunpack.c.h.b16 %v691
        %v786 = vunpack.c.l.b16 %v692
        %v787 = vunpack.c.l.b16 %v693
        %v788 = vunpack.c.h.b16 %v693
        %v789 = vunpack.c.l.b16 %v694
        %v790 = vunpack.c.l.b16 %v695
        %v791 = vunpack.c.h.b16 %v695
        %v792 = vunpack.c.l.b16 %v696
        %v793 = vunpack.c.l.b16 %v697
        %v794 = vunpack.c.h.b16 %v697
        %v795 = vunpack.c.l.b16 %v698
        %v796 = vpack.c.b16 %v751, %v748
        %v797 = vpack.c.b16 %v752, %v749
        %v798 = vpack.c.b16 %v753, %v750
        %v799 = vpack.c.b16 %v757, %v754
        %v800 = vpack.c.b16 %v758, %v755
        %v801 = vpack.c.b16 %v759, %v756
        %v802 = vpack.c.b16 %v763, %v760
        %v803 = vpack.c.b16 %v764, %v761
        %v804 = vpack.c.b16 %v765, %v762
        %v805 = vpack.c.b16 %v769, %v766
        %v806 = vpack.c.b16 %v770, %v767
        %v807 = vpack.c.b16 %v771, %v768
        %v808 = vpack.c.b16 %v775, %v772
        %v809 = vpack.c.b16 %v776, %v773
        %v810 = vpack.c.b16 %v777, %v774
        %v811 = vpack.c.b16 %v781, %v778
        %v812 = vpack.c.b16 %v782, %v779
        %v813 = vpack.c.b16 %v783, %v780
        %v814 = vpack.c.b16 %v787, %v784
        %v815 = vpack.c.b16 %v788, %v785
        %v816 = vpack.c.b16 %v789, %v786
        %v817 = vpack.c.b16 %v793, %v790
        %v818 = vpack.c.b16 %v794, %v791
        %v819 = vpack.c.b16 %v795, %v792
        %844 = vmatprep.subr.bf16.mxu0 %v797
        %845 = vmatpush1.bf16.msra.mxu0 %v796
        %846 = vmatprep.subr.bf16.mxu0 %v800
        %847 = vmatpush1.bf16.msra.mxu0 %v799
        %848 = vmatprep.subr.bf16.mxu0 %v803
        %849 = vmatpush1.bf16.msra.mxu0 %v802
        %850 = vmatprep.subr.bf16.mxu0 %v806
        %851 = vmatpush1.bf16.msra.mxu0 %v805
        %852 = vmatprep.subr.bf16.mxu0 %v809
        %853 = vmatpush1.bf16.msra.mxu0 %v808
        %854 = vmatprep.subr.bf16.mxu0 %v812
        %855 = vmatpush1.bf16.msra.mxu0 %v811
        %856 = vmatprep.subr.bf16.mxu0 %v815
        %857 = vmatpush1.bf16.msra.mxu0 %v814
        %858 = vmatprep.subr.bf16.mxu0 %v818
        %859 = vmatpush1.bf16.msra.mxu0 %v817
        %860 = vmatprep.subr.bf16.mxu0 0
        %861 = vmatpush1.bf16.msra.mxu0 0
        %862 = vmatprep.subr.bf16.mxu0 0
        %863 = vmatpush1.bf16.msra.mxu0 0
        %864 = vmatprep.subr.bf16.mxu0 0
        %865 = vmatpush1.bf16.msra.mxu0 0
        %866 = vmatprep.subr.bf16.mxu0 0
        %867 = vmatpush1.bf16.msra.mxu0 0
        %868 = vmatprep.subr.bf16.mxu0 0
        %869 = vmatpush1.bf16.msra.mxu0 0
        %870 = vmatprep.subr.bf16.mxu0 0
        %871 = vmatpush1.bf16.msra.mxu0 0
        %872 = vmatprep.subr.bf16.mxu0 0
        %873 = vmatpush1.bf16.msra.mxu0 0
        %874 = vmatprep.subr.bf16.mxu0 0
        %875 = vmatpush1.bf16.msra.mxu0 0
        %876 = vmatprep.mubr.bf16.mxu0 0
        %877 = vmatmul.mubr.bf16.gmra.mrb[0].mxu0 %v664
        %v878 = vpop.f32.mrb[0].mxu0
        %v879 = vadd.f32 %v704, %v878
        %v880 = vpop.f32.mrb[0].mxu0
        %v881 = vadd.f32 %v708, %v880
        %v882 = vpop.f32.mrb[0].mxu0
        %v883 = vadd.f32 %v704, %v882
        %v884 = vpop.f32.mrb[0].mxu0
        %v885 = vadd.f32 %v708, %v884
        %886 = vdwg.mxu0
        %887 = vmatprep.subr.bf16.mxu0 0
        %888 = vmatpush1.bf16.msra.mxu0 %v798
        %889 = vmatprep.subr.bf16.mxu0 0
        %890 = vmatpush1.bf16.msra.mxu0 %v801
        %891 = vmatprep.subr.bf16.mxu0 0
        %892 = vmatpush1.bf16.msra.mxu0 %v804
        %893 = vmatprep.subr.bf16.mxu0 0
        %894 = vmatpush1.bf16.msra.mxu0 %v807
        %895 = vmatprep.subr.bf16.mxu0 0
        %896 = vmatpush1.bf16.msra.mxu0 %v810
        %897 = vmatprep.subr.bf16.mxu0 0
        %898 = vmatpush1.bf16.msra.mxu0 %v813
        %899 = vmatprep.subr.bf16.mxu0 0
        %900 = vmatpush1.bf16.msra.mxu0 %v816
        %901 = vmatprep.subr.bf16.mxu0 0
        %902 = vmatpush1.bf16.msra.mxu0 %v819
        %903 = vmatprep.subr.bf16.mxu0 0
        %904 = vmatpush1.bf16.msra.mxu0 0
        %905 = vmatprep.subr.bf16.mxu0 0
        %906 = vmatpush1.bf16.msra.mxu0 0
        %907 = vmatprep.subr.bf16.mxu0 0
        %908 = vmatpush1.bf16.msra.mxu0 0
        %909 = vmatprep.subr.bf16.mxu0 0
        %910 = vmatpush1.bf16.msra.mxu0 0
        %911 = vmatprep.subr.bf16.mxu0 0
        %912 = vmatpush1.bf16.msra.mxu0 0
        %913 = vmatprep.subr.bf16.mxu0 0
        %914 = vmatpush1.bf16.msra.mxu0 0
        %915 = vmatprep.subr.bf16.mxu0 0
        %916 = vmatpush1.bf16.msra.mxu0 0
        %917 = vmatprep.subr.bf16.mxu0 0
        %918 = vmatpush1.bf16.msra.mxu0 0
        %919 = vmatprep.mubr.bf16.mxu0 0
        %920 = vmatmul.mubr.bf16.gmra.mrb[0].mxu0 %v664
        %v921 = vpop.f32.mrb[0].mxu0
        %v922 = vadd.f32 %v712, %v921
        %v923 = vpop.f32.mrb[0].mxu0
        %v924 = vpop.f32.mrb[0].mxu0
        %v925 = vadd.f32 %v712, %v924
        %v926 = vpop.f32.mrb[0].mxu0
        %927 = vdwg.mxu0
        %v928 = vpack.c.bf16 %v879, %v879
        %v929 = vpack.c.bf16 %v883, %v883
        %v930 = vpack.c.bf16 %v881, %v881
        %v931 = vpack.c.bf16 %v885, %v885
        %v932 = vpack.c.bf16 %v922, %v922
        %v933 = vpack.c.bf16 %v925, %v925
        %v936 = vlaneseq
        %v937 = vshrl.u32 %v936, 7
        %v938 = vsub.s32 0, %v937
        %v939 = vrot.slane %v665, %v938
        %v940 = vlaneseq
        %v941 = vshrl.u32 %v940, 7
        %v942 = vsub.s32 0, %v941
        %v943 = vrot.slane %v666, %v942
        %vm946 = vcmask 523264
        %v948 = vsel %vm946, %v928, 0
        %v951 = vsel %vm946, %v930, 0
        %953 = vmatprep.subr.bf16.mxu0 0
        %954 = vmatpush1.bf16.xpose.msra.mxu0 %v951
        %955 = vmatprep.subr.bf16.mxu0 0
        %956 = vmatpush1.bf16.xpose.msra.mxu0 0
        %957 = vmatprep.subr.bf16.mxu0 0
        %958 = vmatpush1.bf16.xpose.msra.mxu0 0
        %959 = vmatprep.subr.bf16.mxu0 0
        %960 = vmatpush1.bf16.xpose.msra.mxu0 0
        %961 = vmatprep.subr.bf16.mxu0 0
        %962 = vmatpush1.bf16.xpose.msra.mxu0 0
        %963 = vmatprep.subr.bf16.mxu0 0
        %964 = vmatpush1.bf16.xpose.msra.mxu0 0
        %965 = vmatprep.subr.bf16.mxu0 0
        %966 = vmatpush1.bf16.xpose.msra.mxu0 0
        %967 = vmatprep.subr.bf16.mxu0 0
        %968 = vmatpush1.bf16.xpose.msra.mxu0 0
        %969 = vmatprep.subr.bf16.mxu0 0
        %970 = vmatpush1.bf16.xpose.msra.mxu0 0
        %971 = vmatprep.subr.bf16.mxu0 0
        %972 = vmatpush1.bf16.xpose.msra.mxu0 0
        %973 = vmatprep.subr.bf16.mxu0 0
        %974 = vmatpush1.bf16.xpose.msra.mxu0 0
        %975 = vmatprep.subr.bf16.mxu0 0
        %976 = vmatpush1.bf16.xpose.msra.mxu0 0
        %977 = vmatprep.subr.bf16.mxu0 0
        %978 = vmatpush1.bf16.xpose.msra.mxu0 0
        %979 = vmatprep.subr.bf16.mxu0 0
        %980 = vmatpush1.bf16.xpose.msra.mxu0 0
        %981 = vmatprep.subr.bf16.mxu0 0
        %982 = vmatpush1.bf16.xpose.msra.mxu0 0
        %983 = vmatprep.subr.bf16.mxu0 0
        %984 = vmatpush1.bf16.xpose.msra.mxu0 0
        %985 = vmatprep.mubr.bf16.mxu0 0
        %986 = vmatmul.mubr.bf16.gmra.mrb[0].mxu0 %v948
        %v987 = vpop.f32.mrb[0].mxu0
        %v988 = vadd.f32 %v939, %v987
        %v989 = vpop.f32.mrb[0].mxu0
        %v990 = vpop.f32.mrb[0].mxu0
        %v991 = vpop.f32.mrb[0].mxu0
        %992 = vdwg.mxu0
        %v994 = vsel %vm946, %v929, 0
        %v997 = vsel %vm946, %v931, 0
        %999 = vmatprep.subr.bf16.mxu0 0
        %1000 = vmatpush1.bf16.xpose.msra.mxu0 %v997
        %1001 = vmatprep.subr.bf16.mxu0 0
        %1002 = vmatpush1.bf16.xpose.msra.mxu0 0
        %1003 = vmatprep.subr.bf16.mxu0 0
        %1004 = vmatpush1.bf16.xpose.msra.mxu0 0
        %1005 = vmatprep.subr.bf16.mxu0 0
        %1006 = vmatpush1.bf16.xpose.msra.mxu0 0
        %1007 = vmatprep.subr.bf16.mxu0 0
        %1008 = vmatpush1.bf16.xpose.msra.mxu0 0
        %1009 = vmatprep.subr.bf16.mxu0 0
        %1010 = vmatpush1.bf16.xpose.msra.mxu0 0
        %1011 = vmatprep.subr.bf16.mxu0 0
        %1012 = vmatpush1.bf16.xpose.msra.mxu0 0
        %1013 = vmatprep.subr.bf16.mxu0 0
        %1014 = vmatpush1.bf16.xpose.msra.mxu0 0
        %1015 = vmatprep.subr.bf16.mxu0 0
        %1016 = vmatpush1.bf16.xpose.msra.mxu0 0
        %1017 = vmatprep.subr.bf16.mxu0 0
        %1018 = vmatpush1.bf16.xpose.msra.mxu0 0
        %1019 = vmatprep.subr.bf16.mxu0 0
        %1020 = vmatpush1.bf16.xpose.msra.mxu0 0
        %1021 = vmatprep.subr.bf16.mxu0 0
        %1022 = vmatpush1.bf16.xpose.msra.mxu0 0
        %1023 = vmatprep.subr.bf16.mxu0 0
        %1024 = vmatpush1.bf16.xpose.msra.mxu0 0
        %1025 = vmatprep.subr.bf16.mxu0 0
        %1026 = vmatpush1.bf16.xpose.msra.mxu0 0
        %1027 = vmatprep.subr.bf16.mxu0 0
        %1028 = vmatpush1.bf16.xpose.msra.mxu0 0
        %1029 = vmatprep.subr.bf16.mxu0 0
        %1030 = vmatpush1.bf16.xpose.msra.mxu0 0
        %1031 = vmatprep.mubr.bf16.mxu0 0
        %1032 = vmatmul.mubr.bf16.gmra.mrb[0].mxu0 %v994
        %v1033 = vpop.f32.mrb[0].mxu0
        %v1034 = vadd.f32 %v943, %v1033
        %v1035 = vpop.f32.mrb[0].mxu0
        %v1036 = vpop.f32.mrb[0].mxu0
        %v1037 = vpop.f32.mrb[0].mxu0
        %1038 = vdwg.mxu0
        %vm1039 = vcmask 64512
        %v1040 = vsel %vm1039, %v988, -inf
        %1041 = vmax.xlane.f32.xlu0 %v1040
        %v1042 = vpop.xlane.xlu0 %1041
        %v1043 = vsel %vm1039, %v1034, -inf
        %1044 = vmax.xlane.f32.xlu0 %v1043
        %v1045 = vpop.xlane.xlu0 %1044
        %v1046 = vsub.f32 %v988, %v1042
        %v1047 = vsub.f32 %v1034, %v1045
        %v1048 = vmul.f32 %v1046, 1.442695
        %v1049 = vpow.pop %v1048
        %v1050 = vmul.f32 %v1047, 1.442695
        %v1051 = vpow.pop %v1050
        %v1052 = vsel %vm1039, %v1049, 0.0
        %1053 = vadd.xlane.f32.xlu0 %v1052
        %v1054 = vpop.xlane.xlu0 %1053
        %v1055 = vsel %vm1039, %v1051, 0.0
        %1056 = vadd.xlane.f32.xlu0 %v1055
        %v1057 = vpop.xlane.xlu0 %1056
        %v1058 = vrcp.pop %v1054
        %v1059 = vrcp.pop %v1057
        %v1060 = vmul.f32 %v1049, %v1058
        %v1061 = vmul.f32 %v1051, %v1059
        %v1062 = vpack.c.bf16 %v1060, %v1060
        %v1063 = vpack.c.bf16 %v1061, %v1061
        %v1065 = vsel %vm1039, %v1062, 0
        %vm1067 = vcmask 1043456
        %v1069 = vsel %vm1067, %v932, 0
        %1071 = vmatprep.subr.bf16.mxu0 0
        %1072 = vmatpush1.bf16.msra.mxu0 %v1069
        %1073 = vmatprep.subr.bf16.mxu0 0
        %1074 = vmatpush1.bf16.msra.mxu0 0
        %1075 = vmatprep.subr.bf16.mxu0 0
        %1076 = vmatpush1.bf16.msra.mxu0 0
        %1077 = vmatprep.subr.bf16.mxu0 0
        %1078 = vmatpush1.bf16.msra.mxu0 0
        %1079 = vmatprep.subr.bf16.mxu0 0
        %1080 = vmatpush1.bf16.msra.mxu0 0
        %1081 = vmatprep.subr.bf16.mxu0 0
        %1082 = vmatpush1.bf16.msra.mxu0 0
        %1083 = vmatprep.subr.bf16.mxu0 0
        %1084 = vmatpush1.bf16.msra.mxu0 0
        %1085 = vmatprep.subr.bf16.mxu0 0
        %1086 = vmatpush1.bf16.msra.mxu0 0
        %1087 = vmatprep.subr.bf16.mxu0 0
        %1088 = vmatpush1.bf16.msra.mxu0 0
        %1089 = vmatprep.subr.bf16.mxu0 0
        %1090 = vmatpush1.bf16.msra.mxu0 0
        %1091 = vmatprep.subr.bf16.mxu0 0
        %1092 = vmatpush1.bf16.msra.mxu0 0
        %1093 = vmatprep.subr.bf16.mxu0 0
        %1094 = vmatpush1.bf16.msra.mxu0 0
        %1095 = vmatprep.subr.bf16.mxu0 0
        %1096 = vmatpush1.bf16.msra.mxu0 0
        %1097 = vmatprep.subr.bf16.mxu0 0
        %1098 = vmatpush1.bf16.msra.mxu0 0
        %1099 = vmatprep.subr.bf16.mxu0 0
        %1100 = vmatpush1.bf16.msra.mxu0 0
        %1101 = vmatprep.subr.bf16.mxu0 0
        %1102 = vmatpush1.bf16.msra.mxu0 0
        %1103 = vmatprep.mubr.bf16.mxu0 0
        %1104 = vmatmul.mubr.bf16.gmra.mrb[0].mxu0 %v1065
        %v1105 = vpop.f32.mrb[0].mxu0
        %v1106 = vadd.f32 0.0, %v1105
        %v1107 = vpop.f32.mrb[0].mxu0
        %v1108 = vpop.f32.mrb[0].mxu0
        %v1109 = vpop.f32.mrb[0].mxu0
        %1110 = vdwg.mxu0
        %v1112 = vsel %vm1039, %v1063, 0
        %v1115 = vsel %vm1067, %v933, 0
        %1117 = vmatprep.subr.bf16.mxu0 0
        %1118 = vmatpush1.bf16.msra.mxu0 %v1115
        %1119 = vmatprep.subr.bf16.mxu0 0
        %1120 = vmatpush1.bf16.msra.mxu0 0
        %1121 = vmatprep.subr.bf16.mxu0 0
        %1122 = vmatpush1.bf16.msra.mxu0 0
        %1123 = vmatprep.subr.bf16.mxu0 0
        %1124 = vmatpush1.bf16.msra.mxu0 0
        %1125 = vmatprep.subr.bf16.mxu0 0
        %1126 = vmatpush1.bf16.msra.mxu0 0
        %1127 = vmatprep.subr.bf16.mxu0 0
        %1128 = vmatpush1.bf16.msra.mxu0 0
        %1129 = vmatprep.subr.bf16.mxu0 0
        %1130 = vmatpush1.bf16.msra.mxu0 0
        %1131 = vmatprep.subr.bf16.mxu0 0
        %1132 = vmatpush1.bf16.msra.mxu0 0
        %1133 = vmatprep.subr.bf16.mxu0 0
        %1134 = vmatpush1.bf16.msra.mxu0 0
        %1135 = vmatprep.subr.bf16.mxu0 0
        %1136 = vmatpush1.bf16.msra.mxu0 0
        %1137 = vmatprep.subr.bf16.mxu0 0
        %1138 = vmatpush1.bf16.msra.mxu0 0
        %1139 = vmatprep.subr.bf16.mxu0 0
        %1140 = vmatpush1.bf16.msra.mxu0 0
        %1141 = vmatprep.subr.bf16.mxu0 0
        %1142 = vmatpush1.bf16.msra.mxu0 0
        %1143 = vmatprep.subr.bf16.mxu0 0
        %1144 = vmatpush1.bf16.msra.mxu0 0
        %1145 = vmatprep.subr.bf16.mxu0 0
        %1146 = vmatpush1.bf16.msra.mxu0 0
        %1147 = vmatprep.subr.bf16.mxu0 0
        %1148 = vmatpush1.bf16.msra.mxu0 0
        %1149 = vmatprep.mubr.bf16.mxu0 0
        %1150 = vmatmul.mubr.bf16.gmra.mrb[0].mxu0 %v1112
        %v1151 = vpop.f32.mrb[0].mxu0
        %v1152 = vadd.f32 0.0, %v1151
        %v1153 = vpop.f32.mrb[0].mxu0
        %v1154 = vpop.f32.mrb[0].mxu0
        %v1155 = vpop.f32.mrb[0].mxu0
        %1156 = vdwg.mxu0
        %v1157 = vpack.c.bf16 %v1152, %v1106
        %v1158 = vld [vmem:[%s506] sm:$0xf]
        %v1159 = vld [vmem:[%s506 + $0x4] sm:$0xf]
        %v1160 = vld [vmem:[%s506 + $0x8] sm:$0xf]
        %v1161 = vld [vmem:[%s506 + $0xc] sm:$0xf]
        %v1162 = vld [vmem:[%s506 + $0x10] sm:$0xf]
        %v1163 = vld [vmem:[%s506 + $0x14] sm:$0xf]
        %v1164 = vld [vmem:[%s506 + $0x18] sm:$0xf]
        %v1165 = vld [vmem:[%s506 + $0x1c] sm:$0xf]
        %1167 = vrot.lane.b32.xlu0 %v928, 64
        %v1168 = vpop.permute.xlu0 %1167
        %1170 = vrot.lane.b32.xlu0 %v930, 64
        %v1171 = vpop.permute.xlu0 %1170
        %v1173 = vsel %vm946, %v1168, 0
        %v1176 = vsel %vm946, %v1171, 0
        %1178 = vmatprep.subr.bf16.mxu0 0
        %1179 = vmatpush1.bf16.xpose.msra.mxu0 %v1176
        %1180 = vmatprep.subr.bf16.mxu0 0
        %1181 = vmatpush1.bf16.xpose.msra.mxu0 0
        %1182 = vmatprep.subr.bf16.mxu0 0
        %1183 = vmatpush1.bf16.xpose.msra.mxu0 0
        %1184 = vmatprep.subr.bf16.mxu0 0
        %1185 = vmatpush1.bf16.xpose.msra.mxu0 0
        %1186 = vmatprep.subr.bf16.mxu0 0
        %1187 = vmatpush1.bf16.xpose.msra.mxu0 0
        %1188 = vmatprep.subr.bf16.mxu0 0
        %1189 = vmatpush1.bf16.xpose.msra.mxu0 0
        %1190 = vmatprep.subr.bf16.mxu0 0
        %1191 = vmatpush1.bf16.xpose.msra.mxu0 0
        %1192 = vmatprep.subr.bf16.mxu0 0
        %1193 = vmatpush1.bf16.xpose.msra.mxu0 0
        %1194 = vmatprep.subr.bf16.mxu0 0
        %1195 = vmatpush1.bf16.xpose.msra.mxu0 0
        %1196 = vmatprep.subr.bf16.mxu0 0
        %1197 = vmatpush1.bf16.xpose.msra.mxu0 0
        %1198 = vmatprep.subr.bf16.mxu0 0
        %1199 = vmatpush1.bf16.xpose.msra.mxu0 0
        %1200 = vmatprep.subr.bf16.mxu0 0
        %1201 = vmatpush1.bf16.xpose.msra.mxu0 0
        %1202 = vmatprep.subr.bf16.mxu0 0
        %1203 = vmatpush1.bf16.xpose.msra.mxu0 0
        %1204 = vmatprep.subr.bf16.mxu0 0
        %1205 = vmatpush1.bf16.xpose.msra.mxu0 0
        %1206 = vmatprep.subr.bf16.mxu0 0
        %1207 = vmatpush1.bf16.xpose.msra.mxu0 0
        %1208 = vmatprep.subr.bf16.mxu0 0
        %1209 = vmatpush1.bf16.xpose.msra.mxu0 0
        %1210 = vmatprep.mubr.bf16.mxu0 0
        %1211 = vmatmul.mubr.bf16.gmra.mrb[0].mxu0 %v1173
        %v1212 = vpop.f32.mrb[0].mxu0
        %v1213 = vadd.f32 %v939, %v1212
        %v1214 = vpop.f32.mrb[0].mxu0
        %v1215 = vpop.f32.mrb[0].mxu0
        %v1216 = vpop.f32.mrb[0].mxu0
        %1217 = vdwg.mxu0
        %1219 = vrot.lane.b32.xlu0 %v929, 64
        %v1220 = vpop.permute.xlu0 %1219
        %1222 = vrot.lane.b32.xlu0 %v931, 64
        %v1223 = vpop.permute.xlu0 %1222
        %v1225 = vsel %vm946, %v1220, 0
        %v1228 = vsel %vm946, %v1223, 0
        %1230 = vmatprep.subr.bf16.mxu0 0
        %1231 = vmatpush1.bf16.xpose.msra.mxu0 %v1228
        %1232 = vmatprep.subr.bf16.mxu0 0
        %1233 = vmatpush1.bf16.xpose.msra.mxu0 0
        %1234 = vmatprep.subr.bf16.mxu0 0
        %1235 = vmatpush1.bf16.xpose.msra.mxu0 0
        %1236 = vmatprep.subr.bf16.mxu0 0
        %1237 = vmatpush1.bf16.xpose.msra.mxu0 0
        %1238 = vmatprep.subr.bf16.mxu0 0
        %1239 = vmatpush1.bf16.xpose.msra.mxu0 0
        %1240 = vmatprep.subr.bf16.mxu0 0
        %1241 = vmatpush1.bf16.xpose.msra.mxu0 0
        %1242 = vmatprep.subr.bf16.mxu0 0
        %1243 = vmatpush1.bf16.xpose.msra.mxu0 0
        %1244 = vmatprep.subr.bf16.mxu0 0
        %1245 = vmatpush1.bf16.xpose.msra.mxu0 0
        %1246 = vmatprep.subr.bf16.mxu0 0
        %1247 = vmatpush1.bf16.xpose.msra.mxu0 0
        %1248 = vmatprep.subr.bf16.mxu0 0
        %1249 = vmatpush1.bf16.xpose.msra.mxu0 0
        %1250 = vmatprep.subr.bf16.mxu0 0
        %1251 = vmatpush1.bf16.xpose.msra.mxu0 0
        %1252 = vmatprep.subr.bf16.mxu0 0
        %1253 = vmatpush1.bf16.xpose.msra.mxu0 0
        %1254 = vmatprep.subr.bf16.mxu0 0
        %1255 = vmatpush1.bf16.xpose.msra.mxu0 0
        %1256 = vmatprep.subr.bf16.mxu0 0
        %1257 = vmatpush1.bf16.xpose.msra.mxu0 0
        %1258 = vmatprep.subr.bf16.mxu0 0
        %1259 = vmatpush1.bf16.xpose.msra.mxu0 0
        %1260 = vmatprep.subr.bf16.mxu0 0
        %1261 = vmatpush1.bf16.xpose.msra.mxu0 0
        %1262 = vmatprep.mubr.bf16.mxu0 0
        %1263 = vmatmul.mubr.bf16.gmra.mrb[0].mxu0 %v1225
        %v1264 = vpop.f32.mrb[0].mxu0
        %v1265 = vadd.f32 %v943, %v1264
        %v1266 = vpop.f32.mrb[0].mxu0
        %v1267 = vpop.f32.mrb[0].mxu0
        %v1268 = vpop.f32.mrb[0].mxu0
        %1269 = vdwg.mxu0
        %v1270 = vsel %vm1039, %v1213, -inf
        %1271 = vmax.xlane.f32.xlu0 %v1270
        %v1272 = vpop.xlane.xlu0 %1271
        %v1273 = vsel %vm1039, %v1265, -inf
        %1274 = vmax.xlane.f32.xlu0 %v1273
        %v1275 = vpop.xlane.xlu0 %1274
        %v1276 = vsub.f32 %v1213, %v1272
        %v1277 = vsub.f32 %v1265, %v1275
        %v1278 = vmul.f32 %v1276, 1.442695
        %v1279 = vpow.pop %v1278
        %v1280 = vmul.f32 %v1277, 1.442695
        %v1281 = vpow.pop %v1280
        %v1282 = vsel %vm1039, %v1279, 0.0
        %1283 = vadd.xlane.f32.xlu0 %v1282
        %v1284 = vpop.xlane.xlu0 %1283
        %v1285 = vsel %vm1039, %v1281, 0.0
        %1286 = vadd.xlane.f32.xlu0 %v1285
        %v1287 = vpop.xlane.xlu0 %1286
        %v1288 = vrcp.pop %v1284
        %v1289 = vrcp.pop %v1287
        %v1290 = vmul.f32 %v1279, %v1288
        %v1291 = vmul.f32 %v1281, %v1289
        %v1292 = vpack.c.bf16 %v1290, %v1290
        %v1293 = vpack.c.bf16 %v1291, %v1291
        %1295 = vrot.lane.b32.xlu0 %v932, 64
        %v1296 = vpop.permute.xlu0 %1295
        %v1298 = vsel %vm1039, %v1292, 0
        %v1301 = vsel %vm1067, %v1296, 0
        %1303 = vmatprep.subr.bf16.mxu0 0
        %1304 = vmatpush1.bf16.msra.mxu0 %v1301
        %1305 = vmatprep.subr.bf16.mxu0 0
        %1306 = vmatpush1.bf16.msra.mxu0 0
        %1307 = vmatprep.subr.bf16.mxu0 0
        %1308 = vmatpush1.bf16.msra.mxu0 0
        %1309 = vmatprep.subr.bf16.mxu0 0
        %1310 = vmatpush1.bf16.msra.mxu0 0
        %1311 = vmatprep.subr.bf16.mxu0 0
        %1312 = vmatpush1.bf16.msra.mxu0 0
        %1313 = vmatprep.subr.bf16.mxu0 0
        %1314 = vmatpush1.bf16.msra.mxu0 0
        %1315 = vmatprep.subr.bf16.mxu0 0
        %1316 = vmatpush1.bf16.msra.mxu0 0
        %1317 = vmatprep.subr.bf16.mxu0 0
        %1318 = vmatpush1.bf16.msra.mxu0 0
        %1319 = vmatprep.subr.bf16.mxu0 0
        %1320 = vmatpush1.bf16.msra.mxu0 0
        %1321 = vmatprep.subr.bf16.mxu0 0
        %1322 = vmatpush1.bf16.msra.mxu0 0
        %1323 = vmatprep.subr.bf16.mxu0 0
        %1324 = vmatpush1.bf16.msra.mxu0 0
        %1325 = vmatprep.subr.bf16.mxu0 0
        %1326 = vmatpush1.bf16.msra.mxu0 0
        %1327 = vmatprep.subr.bf16.mxu0 0
        %1328 = vmatpush1.bf16.msra.mxu0 0
        %1329 = vmatprep.subr.bf16.mxu0 0
        %1330 = vmatpush1.bf16.msra.mxu0 0
        %1331 = vmatprep.subr.bf16.mxu0 0
        %1332 = vmatpush1.bf16.msra.mxu0 0
        %1333 = vmatprep.subr.bf16.mxu0 0
        %1334 = vmatpush1.bf16.msra.mxu0 0
        %1335 = vmatprep.mubr.bf16.mxu0 0
        %1336 = vmatmul.mubr.bf16.gmra.mrb[0].mxu0 %v1298
        %v1337 = vpop.f32.mrb[0].mxu0
        %v1338 = vadd.f32 0.0, %v1337
        %v1339 = vpop.f32.mrb[0].mxu0
        %v1340 = vpop.f32.mrb[0].mxu0
        %v1341 = vpop.f32.mrb[0].mxu0
        %1342 = vdwg.mxu0
        %1344 = vrot.lane.b32.xlu0 %v933, 64
        %v1345 = vpop.permute.xlu0 %1344
        %v1347 = vsel %vm1039, %v1293, 0
        %v1350 = vsel %vm1067, %v1345, 0
        %1352 = vmatprep.subr.bf16.mxu0 0
        %1353 = vmatpush1.bf16.msra.mxu0 %v1350
        %1354 = vmatprep.subr.bf16.mxu0 0
        %1355 = vmatpush1.bf16.msra.mxu0 0
        %1356 = vmatprep.subr.bf16.mxu0 0
        %1357 = vmatpush1.bf16.msra.mxu0 0
        %1358 = vmatprep.subr.bf16.mxu0 0
        %1359 = vmatpush1.bf16.msra.mxu0 0
        %1360 = vmatprep.subr.bf16.mxu0 0
        %1361 = vmatpush1.bf16.msra.mxu0 0
        %1362 = vmatprep.subr.bf16.mxu0 0
        %1363 = vmatpush1.bf16.msra.mxu0 0
        %1364 = vmatprep.subr.bf16.mxu0 0
        %1365 = vmatpush1.bf16.msra.mxu0 0
        %1366 = vmatprep.subr.bf16.mxu0 0
        %1367 = vmatpush1.bf16.msra.mxu0 0
        %1368 = vmatprep.subr.bf16.mxu0 0
        %1369 = vmatpush1.bf16.msra.mxu0 0
        %1370 = vmatprep.subr.bf16.mxu0 0
        %1371 = vmatpush1.bf16.msra.mxu0 0
        %1372 = vmatprep.subr.bf16.mxu0 0
        %1373 = vmatpush1.bf16.msra.mxu0 0
        %1374 = vmatprep.subr.bf16.mxu0 0
        %1375 = vmatpush1.bf16.msra.mxu0 0
        %1376 = vmatprep.subr.bf16.mxu0 0
        %1377 = vmatpush1.bf16.msra.mxu0 0
        %1378 = vmatprep.subr.bf16.mxu0 0
        %1379 = vmatpush1.bf16.msra.mxu0 0
        %1380 = vmatprep.subr.bf16.mxu0 0
        %1381 = vmatpush1.bf16.msra.mxu0 0
        %1382 = vmatprep.subr.bf16.mxu0 0
        %1383 = vmatpush1.bf16.msra.mxu0 0
        %1384 = vmatprep.mubr.bf16.mxu0 0
        %1385 = vmatmul.mubr.bf16.gmra.mrb[0].mxu0 %v1347
        %v1386 = vpop.f32.mrb[0].mxu0
        %v1387 = vadd.f32 0.0, %v1386
        %v1388 = vpop.f32.mrb[0].mxu0
        %v1389 = vpop.f32.mrb[0].mxu0
        %v1390 = vpop.f32.mrb[0].mxu0
        %1391 = vdwg.mxu0
        %v1392 = vpack.c.bf16 %v1387, %v1338
        %v1393 = vld [vmem:[%s506 + $0x20] sm:$0xf]
        %v1394 = vld [vmem:[%s506 + $0x24] sm:$0xf]
        %v1395 = vld [vmem:[%s506 + $0x28] sm:$0xf]
        %v1396 = vld [vmem:[%s506 + $0x2c] sm:$0xf]
        %v1397 = vld [vmem:[%s506 + $0x30] sm:$0xf]
        %v1398 = vld [vmem:[%s506 + $0x34] sm:$0xf]
        %v1399 = vld [vmem:[%s506 + $0x38] sm:$0xf]
        %v1400 = vld [vmem:[%s506 + $0x3c] sm:$0xf]
        %v1409 = vunpack.c.l.b16 %v1393
        %v1410 = vunpack.c.l.b16 %v1394
        %v1411 = vunpack.c.l.b16 %v1395
        %v1412 = vunpack.c.l.b16 %v1396
        %v1413 = vunpack.c.l.b16 %v1397
        %v1414 = vunpack.c.l.b16 %v1398
        %v1415 = vunpack.c.l.b16 %v1399
        %v1416 = vunpack.c.l.b16 %v1400
        %v1417 = vpack.c.b16 %v1410, %v1409
        %v1418 = vpack.c.b16 %v1412, %v1411
        %v1419 = vpack.c.b16 %v1414, %v1413
        %v1420 = vpack.c.b16 %v1416, %v1415
        %v1426 = vsel %vm946, %v1392, 0
        %1428 = vmatprep.subr.bf16.mxu0 0
        %1429 = vmatpush1.bf16.msra.mxu0 %v1417
        %1430 = vmatprep.subr.bf16.mxu0 0
        %1431 = vmatpush1.bf16.msra.mxu0 %v1418
        %1432 = vmatprep.subr.bf16.mxu0 0
        %1433 = vmatpush1.bf16.msra.mxu0 %v1419
        %1434 = vmatprep.subr.bf16.mxu0 0
        %1435 = vmatpush1.bf16.msra.mxu0 %v1420
        %1436 = vmatprep.subr.bf16.mxu0 0
        %1437 = vmatpush1.bf16.msra.mxu0 0
        %1438 = vmatprep.subr.bf16.mxu0 0
        %1439 = vmatpush1.bf16.msra.mxu0 0
        %1440 = vmatprep.subr.bf16.mxu0 0
        %1441 = vmatpush1.bf16.msra.mxu0 0
        %1442 = vmatprep.subr.bf16.mxu0 0
        %1443 = vmatpush1.bf16.msra.mxu0 0
        %1444 = vmatprep.subr.bf16.mxu0 0
        %1445 = vmatpush1.bf16.msra.mxu0 0
        %1446 = vmatprep.subr.bf16.mxu0 0
        %1447 = vmatpush1.bf16.msra.mxu0 0
        %1448 = vmatprep.subr.bf16.mxu0 0
        %1449 = vmatpush1.bf16.msra.mxu0 0
        %1450 = vmatprep.subr.bf16.mxu0 0
        %1451 = vmatpush1.bf16.msra.mxu0 0
        %1452 = vmatprep.subr.bf16.mxu0 0
        %1453 = vmatpush1.bf16.msra.mxu0 0
        %1454 = vmatprep.subr.bf16.mxu0 0
        %1455 = vmatpush1.bf16.msra.mxu0 0
        %1456 = vmatprep.subr.bf16.mxu0 0
        %1457 = vmatpush1.bf16.msra.mxu0 0
        %1458 = vmatprep.subr.bf16.mxu0 0
        %1459 = vmatpush1.bf16.msra.mxu0 0
        %1460 = vmatprep.mubr.bf16.mxu0 0
        %1461 = vmatmul.mubr.bf16.gmra.mrb[0].mxu0 %v1426
        %v1462 = vpop.f32.mrb[0].mxu0
        %v1463 = vadd.f32 0.0, %v1462
        %v1464 = vpop.f32.mrb[0].mxu0
        %v1465 = vpop.f32.mrb[0].mxu0
        %v1466 = vadd.f32 0.0, %v1465
        %v1467 = vpop.f32.mrb[0].mxu0
        %1468 = vdwg.mxu0
        %v1477 = vunpack.c.l.b16 %v1158
        %v1478 = vunpack.c.l.b16 %v1159
        %v1479 = vunpack.c.l.b16 %v1160
        %v1480 = vunpack.c.l.b16 %v1161
        %v1481 = vunpack.c.l.b16 %v1162
        %v1482 = vunpack.c.l.b16 %v1163
        %v1483 = vunpack.c.l.b16 %v1164
        %v1484 = vunpack.c.l.b16 %v1165
        %v1485 = vpack.c.b16 %v1478, %v1477
        %v1486 = vpack.c.b16 %v1480, %v1479
        %v1487 = vpack.c.b16 %v1482, %v1481
        %v1488 = vpack.c.b16 %v1484, %v1483
        %v1494 = vsel %vm946, %v1157, 0
        %1496 = vmatprep.subr.bf16.mxu0 0
        %1497 = vmatpush1.bf16.msra.mxu0 %v1485
        %1498 = vmatprep.subr.bf16.mxu0 0
        %1499 = vmatpush1.bf16.msra.mxu0 %v1486
        %1500 = vmatprep.subr.bf16.mxu0 0
        %1501 = vmatpush1.bf16.msra.mxu0 %v1487
        %1502 = vmatprep.subr.bf16.mxu0 0
        %1503 = vmatpush1.bf16.msra.mxu0 %v1488
        %1504 = vmatprep.subr.bf16.mxu0 0
        %1505 = vmatpush1.bf16.msra.mxu0 0
        %1506 = vmatprep.subr.bf16.mxu0 0
        %1507 = vmatpush1.bf16.msra.mxu0 0
        %1508 = vmatprep.subr.bf16.mxu0 0
        %1509 = vmatpush1.bf16.msra.mxu0 0
        %1510 = vmatprep.subr.bf16.mxu0 0
        %1511 = vmatpush1.bf16.msra.mxu0 0
        %1512 = vmatprep.subr.bf16.mxu0 0
        %1513 = vmatpush1.bf16.msra.mxu0 0
        %1514 = vmatprep.subr.bf16.mxu0 0
        %1515 = vmatpush1.bf16.msra.mxu0 0
        %1516 = vmatprep.subr.bf16.mxu0 0
        %1517 = vmatpush1.bf16.msra.mxu0 0
        %1518 = vmatprep.subr.bf16.mxu0 0
        %1519 = vmatpush1.bf16.msra.mxu0 0
        %1520 = vmatprep.subr.bf16.mxu0 0
        %1521 = vmatpush1.bf16.msra.mxu0 0
        %1522 = vmatprep.subr.bf16.mxu0 0
        %1523 = vmatpush1.bf16.msra.mxu0 0
        %1524 = vmatprep.subr.bf16.mxu0 0
        %1525 = vmatpush1.bf16.msra.mxu0 0
        %1526 = vmatprep.subr.bf16.mxu0 0
        %1527 = vmatpush1.bf16.msra.mxu0 0
        %1528 = vmatprep.mubr.bf16.mxu0 0
        %1529 = vmatmul.mubr.bf16.gmra.mrb[0].mxu0 %v1494
        %v1530 = vpop.f32.mrb[0].mxu0
        %v1531 = vadd.f32 %v1463, %v1530
        %v1532 = vpop.f32.mrb[0].mxu0
        %v1533 = vpop.f32.mrb[0].mxu0
        %v1534 = vadd.f32 %v1466, %v1533
        %v1535 = vpop.f32.mrb[0].mxu0
        %1536 = vdwg.mxu0
        %v1537 = vld [vmem:[%s614] sm:$0x1]
        %v1538 = vlaneseq
        %v1539 = vshrl.u32 %v1538, 7
        %v1540 = vsub.s32 0, %v1539
        %v1541 = vrot.slane %v1537, %v1540
        %v1542 = vadd.f32 %v1531, %v1541
        %v1543 = vadd.f32 %v1534, %v1541
        %v1544 = vadd.f32 %v662, %v1542
        %v1545 = vadd.f32 %v663, %v1543
        %v1546 = vld [vmem:[%s614 + $0x1] sm:$0x1]
        %v1547 = vld [vmem:[%s614 + $0x2] sm:$0x1]
        %1548 = vadd.xlane.f32.xlu0 %v1544
        %v1549 = vpop.xlane.xlu0 %1548
        %1550 = vadd.xlane.f32.xlu0 %v1545
        %v1551 = vpop.xlane.xlu0 %1550
        %v1552 = vrcp.pop 128.0
        %v1553 = vmul.f32 %v1549, %v1552
        %v1554 = vmul.f32 %v1551, %v1552
        %v1555 = vsub.f32 %v1544, %v1553
        %v1556 = vsub.f32 %v1545, %v1554
        %v1557 = vmul.f32 %v1555, %v1555
        %v1558 = vmul.f32 %v1556, %v1556
        %1559 = vadd.xlane.f32.xlu0 %v1557
        %v1560 = vpop.xlane.xlu0 %1559
        %1561 = vadd.xlane.f32.xlu0 %v1558
        %v1562 = vpop.xlane.xlu0 %1561
        %v1563 = vmul.f32 %v1560, %v1552
        %v1564 = vmul.f32 %v1562, %v1552
        %v1565 = vadd.f32 %v1563, 1e-12
        %v1566 = vadd.f32 %v1564, 1e-12
        %v1567 = vrsqrt.pop %v1565
        %v1568 = vrsqrt.pop %v1566
        %v1569 = vmul.f32 %v1555, %v1567
        %v1570 = vmul.f32 %v1556, %v1568
        %v1571 = vlaneseq
        %v1572 = vshrl.u32 %v1571, 7
        %v1573 = vsub.s32 0, %v1572
        %v1574 = vrot.slane %v1546, %v1573
        %v1575 = vmul.f32 %v1569, %v1574
        %v1576 = vmul.f32 %v1570, %v1574
        %v1577 = vlaneseq
        %v1578 = vshrl.u32 %v1577, 7
        %v1579 = vsub.s32 0, %v1578
        %v1580 = vrot.slane %v1547, %v1579
        %v1581 = vadd.f32 %v1575, %v1580
        %v1582 = vadd.f32 %v1576, %v1580
        %v1583 = vpack.c.bf16 %v1582, %v1581
        %v1584 = vld [vmem:[%s515] sm:$0xff]
        %v1585 = vld [vmem:[%s515 + $0x8] sm:$0xff]
        %v1586 = vld [vmem:[%s515 + $0x10] sm:$0xff]
        %v1587 = vld [vmem:[%s515 + $0x18] sm:$0xff]
        %v1588 = vld [vmem:[%s515 + $0x20] sm:$0xff]
        %v1589 = vld [vmem:[%s515 + $0x28] sm:$0xff]
        %v1590 = vld [vmem:[%s515 + $0x30] sm:$0xff]
        %v1591 = vld [vmem:[%s515 + $0x38] sm:$0xff]
        %v1592 = vld [vmem:[%s515 + $0x40] sm:$0xff]
        %v1593 = vld [vmem:[%s515 + $0x48] sm:$0xff]
        %v1594 = vld [vmem:[%s515 + $0x50] sm:$0xff]
        %v1595 = vld [vmem:[%s515 + $0x58] sm:$0xff]
        %v1596 = vld [vmem:[%s515 + $0x60] sm:$0xff]
        %v1597 = vld [vmem:[%s515 + $0x68] sm:$0xff]
        %v1598 = vld [vmem:[%s515 + $0x70] sm:$0xff]
        %v1599 = vld [vmem:[%s515 + $0x78] sm:$0xff]
        %v1600 = vld [vmem:[%s515 + $0x80] sm:$0xff]
        %v1601 = vld [vmem:[%s515 + $0x88] sm:$0xff]
        %v1602 = vld [vmem:[%s515 + $0x90] sm:$0xff]
        %v1603 = vld [vmem:[%s515 + $0x98] sm:$0xff]
        %v1604 = vld [vmem:[%s515 + $0xa0] sm:$0xff]
        %v1605 = vld [vmem:[%s515 + $0xa8] sm:$0xff]
        %v1606 = vld [vmem:[%s515 + $0xb0] sm:$0xff]
        %v1607 = vld [vmem:[%s515 + $0xb8] sm:$0xff]
        %v1608 = vld [vmem:[%s515 + $0xc0] sm:$0xff]
        %v1609 = vld [vmem:[%s515 + $0xc8] sm:$0xff]
        %v1610 = vld [vmem:[%s515 + $0xd0] sm:$0xff]
        %v1611 = vld [vmem:[%s515 + $0xd8] sm:$0xff]
        %v1612 = vld [vmem:[%s515 + $0xe0] sm:$0xff]
        %v1613 = vld [vmem:[%s515 + $0xe8] sm:$0xff]
        %v1614 = vld [vmem:[%s515 + $0xf0] sm:$0xff]
        %v1615 = vld [vmem:[%s515 + $0xf8] sm:$0xff]
        %v1616 = vld [vmem:[%s610] sm:$0xf]
        %v1618 = vlaneseq
        %v1619 = vshrl.u32 %v1618, 7
        %v1620 = vsub.s32 0, %v1619
        %v1621 = vrot.slane %v1616, %v1620
        %v1622 = vlaneseq
        %v1623 = vshrl.u32 %v1622, 7
        %v1624 = vsub.s32 1, %v1623
        %v1625 = vrot.slane %v1616, %v1624
        %v1626 = vlaneseq
        %v1627 = vshrl.u32 %v1626, 7
        %v1628 = vsub.s32 2, %v1627
        %v1629 = vrot.slane %v1616, %v1628
        %v1630 = vlaneseq
        %v1631 = vshrl.u32 %v1630, 7
        %v1632 = vsub.s32 3, %v1631
        %v1633 = vrot.slane %v1616, %v1632
        %v1670 = vunpack.c.l.b16 %v1584
        %v1671 = vunpack.c.h.b16 %v1584
        %v1672 = vunpack.c.l.b16 %v1585
        %v1673 = vunpack.c.h.b16 %v1585
        %v1674 = vunpack.c.l.b16 %v1586
        %v1675 = vunpack.c.h.b16 %v1586
        %v1676 = vunpack.c.l.b16 %v1587
        %v1677 = vunpack.c.h.b16 %v1587
        %v1678 = vunpack.c.l.b16 %v1588
        %v1679 = vunpack.c.h.b16 %v1588
        %v1680 = vunpack.c.l.b16 %v1589
        %v1681 = vunpack.c.h.b16 %v1589
        %v1682 = vunpack.c.l.b16 %v1590
        %v1683 = vunpack.c.h.b16 %v1590
        %v1684 = vunpack.c.l.b16 %v1591
        %v1685 = vunpack.c.h.b16 %v1591
        %v1686 = vunpack.c.l.b16 %v1592
        %v1687 = vunpack.c.h.b16 %v1592
        %v1688 = vunpack.c.l.b16 %v1593
        %v1689 = vunpack.c.h.b16 %v1593
        %v1690 = vunpack.c.l.b16 %v1594
        %v1691 = vunpack.c.h.b16 %v1594
        %v1692 = vunpack.c.l.b16 %v1595
        %v1693 = vunpack.c.h.b16 %v1595
        %v1694 = vunpack.c.l.b16 %v1596
        %v1695 = vunpack.c.h.b16 %v1596
        %v1696 = vunpack.c.l.b16 %v1597
        %v1697 = vunpack.c.h.b16 %v1597
        %v1698 = vunpack.c.l.b16 %v1598
        %v1699 = vunpack.c.h.b16 %v1598
        %v1700 = vunpack.c.l.b16 %v1599
        %v1701 = vunpack.c.h.b16 %v1599
        %v1702 = vunpack.c.l.b16 %v1600
        %v1703 = vunpack.c.h.b16 %v1600
        %v1704 = vunpack.c.l.b16 %v1601
        %v1705 = vunpack.c.h.b16 %v1601
        %v1706 = vunpack.c.l.b16 %v1602
        %v1707 = vunpack.c.h.b16 %v1602
        %v1708 = vunpack.c.l.b16 %v1603
        %v1709 = vunpack.c.h.b16 %v1603
        %v1710 = vunpack.c.l.b16 %v1604
        %v1711 = vunpack.c.h.b16 %v1604
        %v1712 = vunpack.c.l.b16 %v1605
        %v1713 = vunpack.c.h.b16 %v1605
        %v1714 = vunpack.c.l.b16 %v1606
        %v1715 = vunpack.c.h.b16 %v1606
        %v1716 = vunpack.c.l.b16 %v1607
        %v1717 = vunpack.c.h.b16 %v1607
        %v1718 = vunpack.c.l.b16 %v1608
        %v1719 = vunpack.c.h.b16 %v1608
        %v1720 = vunpack.c.l.b16 %v1609
        %v1721 = vunpack.c.h.b16 %v1609
        %v1722 = vunpack.c.l.b16 %v1610
        %v1723 = vunpack.c.h.b16 %v1610
        %v1724 = vunpack.c.l.b16 %v1611
        %v1725 = vunpack.c.h.b16 %v1611
        %v1726 = vunpack.c.l.b16 %v1612
        %v1727 = vunpack.c.h.b16 %v1612
        %v1728 = vunpack.c.l.b16 %v1613
        %v1729 = vunpack.c.h.b16 %v1613
        %v1730 = vunpack.c.l.b16 %v1614
        %v1731 = vunpack.c.h.b16 %v1614
        %v1732 = vunpack.c.l.b16 %v1615
        %v1733 = vunpack.c.h.b16 %v1615
        %v1734 = vpack.c.b16 %v1674, %v1670
        %v1735 = vpack.c.b16 %v1675, %v1671
        %v1736 = vpack.c.b16 %v1676, %v1672
        %v1737 = vpack.c.b16 %v1677, %v1673
        %v1738 = vpack.c.b16 %v1682, %v1678
        %v1739 = vpack.c.b16 %v1683, %v1679
        %v1740 = vpack.c.b16 %v1684, %v1680
        %v1741 = vpack.c.b16 %v1685, %v1681
        %v1742 = vpack.c.b16 %v1690, %v1686
        %v1743 = vpack.c.b16 %v1691, %v1687
        %v1744 = vpack.c.b16 %v1692, %v1688
        %v1745 = vpack.c.b16 %v1693, %v1689
        %v1746 = vpack.c.b16 %v1698, %v1694
        %v1747 = vpack.c.b16 %v1699, %v1695
        %v1748 = vpack.c.b16 %v1700, %v1696
        %v1749 = vpack.c.b16 %v1701, %v1697
        %v1750 = vpack.c.b16 %v1706, %v1702
        %v1751 = vpack.c.b16 %v1707, %v1703
        %v1752 = vpack.c.b16 %v1708, %v1704
        %v1753 = vpack.c.b16 %v1709, %v1705
        %v1754 = vpack.c.b16 %v1714, %v1710
        %v1755 = vpack.c.b16 %v1715, %v1711
        %v1756 = vpack.c.b16 %v1716, %v1712
        %v1757 = vpack.c.b16 %v1717, %v1713
        %v1758 = vpack.c.b16 %v1722, %v1718
        %v1759 = vpack.c.b16 %v1723, %v1719
        %v1760 = vpack.c.b16 %v1724, %v1720
        %v1761 = vpack.c.b16 %v1725, %v1721
        %v1762 = vpack.c.b16 %v1730, %v1726
        %v1763 = vpack.c.b16 %v1731, %v1727
        %v1764 = vpack.c.b16 %v1732, %v1728
        %v1765 = vpack.c.b16 %v1733, %v1729
        %1798 = vmatprep.subr.bf16.mxu0 %v1735
        %1799 = vmatpush1.bf16.msra.mxu0 %v1734
        %1800 = vmatprep.subr.bf16.mxu0 %v1739
        %1801 = vmatpush1.bf16.msra.mxu0 %v1738
        %1802 = vmatprep.subr.bf16.mxu0 %v1743
        %1803 = vmatpush1.bf16.msra.mxu0 %v1742
        %1804 = vmatprep.subr.bf16.mxu0 %v1747
        %1805 = vmatpush1.bf16.msra.mxu0 %v1746
        %1806 = vmatprep.subr.bf16.mxu0 %v1751
        %1807 = vmatpush1.bf16.msra.mxu0 %v1750
        %1808 = vmatprep.subr.bf16.mxu0 %v1755
        %1809 = vmatpush1.bf16.msra.mxu0 %v1754
        %1810 = vmatprep.subr.bf16.mxu0 %v1759
        %1811 = vmatpush1.bf16.msra.mxu0 %v1758
        %1812 = vmatprep.subr.bf16.mxu0 %v1763
        %1813 = vmatpush1.bf16.msra.mxu0 %v1762
        %1814 = vmatprep.subr.bf16.mxu0 0
        %1815 = vmatpush1.bf16.msra.mxu0 0
        %1816 = vmatprep.subr.bf16.mxu0 0
        %1817 = vmatpush1.bf16.msra.mxu0 0
        %1818 = vmatprep.subr.bf16.mxu0 0
        %1819 = vmatpush1.bf16.msra.mxu0 0
        %1820 = vmatprep.subr.bf16.mxu0 0
        %1821 = vmatpush1.bf16.msra.mxu0 0
        %1822 = vmatprep.subr.bf16.mxu0 0
        %1823 = vmatpush1.bf16.msra.mxu0 0
        %1824 = vmatprep.subr.bf16.mxu0 0
        %1825 = vmatpush1.bf16.msra.mxu0 0
        %1826 = vmatprep.subr.bf16.mxu0 0
        %1827 = vmatpush1.bf16.msra.mxu0 0
        %1828 = vmatprep.subr.bf16.mxu0 0
        %1829 = vmatpush1.bf16.msra.mxu0 0
        %1830 = vmatprep.mubr.bf16.mxu0 0
        %1831 = vmatmul.mubr.bf16.gmra.mrb[0].mxu0 %v1583
        %v1832 = vpop.f32.mrb[0].mxu0
        %v1833 = vadd.f32 %v1621, %v1832
        %v1834 = vpop.f32.mrb[0].mxu0
        %v1835 = vadd.f32 %v1625, %v1834
        %v1836 = vpop.f32.mrb[0].mxu0
        %v1837 = vadd.f32 %v1621, %v1836
        %v1838 = vpop.f32.mrb[0].mxu0
        %v1839 = vadd.f32 %v1625, %v1838
        %1840 = vdwg.mxu0
        %1841 = vmatprep.subr.bf16.mxu0 %v1737
        %1842 = vmatpush1.bf16.msra.mxu0 %v1736
        %1843 = vmatprep.subr.bf16.mxu0 %v1741
        %1844 = vmatpush1.bf16.msra.mxu0 %v1740
        %1845 = vmatprep.subr.bf16.mxu0 %v1745
        %1846 = vmatpush1.bf16.msra.mxu0 %v1744
        %1847 = vmatprep.subr.bf16.mxu0 %v1749
        %1848 = vmatpush1.bf16.msra.mxu0 %v1748
        %1849 = vmatprep.subr.bf16.mxu0 %v1753
        %1850 = vmatpush1.bf16.msra.mxu0 %v1752
        %1851 = vmatprep.subr.bf16.mxu0 %v1757
        %1852 = vmatpush1.bf16.msra.mxu0 %v1756
        %1853 = vmatprep.subr.bf16.mxu0 %v1761
        %1854 = vmatpush1.bf16.msra.mxu0 %v1760
        %1855 = vmatprep.subr.bf16.mxu0 %v1765
        %1856 = vmatpush1.bf16.msra.mxu0 %v1764
        %1857 = vmatprep.subr.bf16.mxu0 0
        %1858 = vmatpush1.bf16.msra.mxu0 0
        %1859 = vmatprep.subr.bf16.mxu0 0
        %1860 = vmatpush1.bf16.msra.mxu0 0
        %1861 = vmatprep.subr.bf16.mxu0 0
        %1862 = vmatpush1.bf16.msra.mxu0 0
        %1863 = vmatprep.subr.bf16.mxu0 0
        %1864 = vmatpush1.bf16.msra.mxu0 0
        %1865 = vmatprep.subr.bf16.mxu0 0
        %1866 = vmatpush1.bf16.msra.mxu0 0
        %1867 = vmatprep.subr.bf16.mxu0 0
        %1868 = vmatpush1.bf16.msra.mxu0 0
        %1869 = vmatprep.subr.bf16.mxu0 0
        %1870 = vmatpush1.bf16.msra.mxu0 0
        %1871 = vmatprep.subr.bf16.mxu0 0
        %1872 = vmatpush1.bf16.msra.mxu0 0
        %1873 = vmatprep.mubr.bf16.mxu0 0
        %1874 = vmatmul.mubr.bf16.gmra.mrb[0].mxu0 %v1583
        %v1875 = vpop.f32.mrb[0].mxu0
        %v1876 = vadd.f32 %v1629, %v1875
        %v1877 = vpop.f32.mrb[0].mxu0
        %v1878 = vadd.f32 %v1633, %v1877
        %v1879 = vpop.f32.mrb[0].mxu0
        %v1880 = vadd.f32 %v1629, %v1879
        %v1881 = vpop.f32.mrb[0].mxu0
        %v1882 = vadd.f32 %v1633, %v1881
        %1883 = vdwg.mxu0
        %v1884 = vmul.f32 %v1833, %v1833
        %v1885 = vmul.f32 %v1835, %v1835
        %v1886 = vmul.f32 %v1876, %v1876
        %v1887 = vmul.f32 %v1878, %v1878
        %v1888 = vmul.f32 %v1837, %v1837
        %v1889 = vmul.f32 %v1839, %v1839
        %v1890 = vmul.f32 %v1880, %v1880
        %v1891 = vmul.f32 %v1882, %v1882
        %v1892 = vmul.f32 %v1833, %v1884
        %v1893 = vmul.f32 %v1835, %v1885
        %v1894 = vmul.f32 %v1876, %v1886
        %v1895 = vmul.f32 %v1878, %v1887
        %v1896 = vmul.f32 %v1837, %v1888
        %v1897 = vmul.f32 %v1839, %v1889
        %v1898 = vmul.f32 %v1880, %v1890
        %v1899 = vmul.f32 %v1882, %v1891
        %v1900 = vmul.f32 %v1892, 0.044715
        %v1901 = vmul.f32 %v1893, 0.044715
        %v1902 = vmul.f32 %v1894, 0.044715
        %v1903 = vmul.f32 %v1895, 0.044715
        %v1904 = vmul.f32 %v1896, 0.044715
        %v1905 = vmul.f32 %v1897, 0.044715
        %v1906 = vmul.f32 %v1898, 0.044715
        %v1907 = vmul.f32 %v1899, 0.044715
        %v1908 = vadd.f32 %v1833, %v1900
        %v1909 = vadd.f32 %v1835, %v1901
        %v1910 = vadd.f32 %v1876, %v1902
        %v1911 = vadd.f32 %v1878, %v1903
        %v1912 = vadd.f32 %v1837, %v1904
        %v1913 = vadd.f32 %v1839, %v1905
        %v1914 = vadd.f32 %v1880, %v1906
        %v1915 = vadd.f32 %v1882, %v1907
        %v1916 = vmul.f32 %v1908, 0.7978846
        %v1917 = vmul.f32 %v1909, 0.7978846
        %v1918 = vmul.f32 %v1910, 0.7978846
        %v1919 = vmul.f32 %v1911, 0.7978846
        %v1920 = vmul.f32 %v1912, 0.7978846
        %v1921 = vmul.f32 %v1913, 0.7978846
        %v1922 = vmul.f32 %v1914, 0.7978846
        %v1923 = vmul.f32 %v1915, 0.7978846
        %v1924 = vtanh.pop %v1916
        %v1925 = vtanh.pop %v1917
        %v1926 = vtanh.pop %v1918
        %v1927 = vtanh.pop %v1919
        %v1928 = vtanh.pop %v1920
        %v1929 = vtanh.pop %v1921
        %v1930 = vtanh.pop %v1922
        %v1931 = vtanh.pop %v1923
        %v1932 = vadd.f32 %v1924, 1.0
        %v1933 = vadd.f32 %v1925, 1.0
        %v1934 = vadd.f32 %v1926, 1.0
        %v1935 = vadd.f32 %v1927, 1.0
        %v1936 = vadd.f32 %v1928, 1.0
        %v1937 = vadd.f32 %v1929, 1.0
        %v1938 = vadd.f32 %v1930, 1.0
        %v1939 = vadd.f32 %v1931, 1.0
        %v1940 = vmul.f32 %v1932, 0.5
        %v1941 = vmul.f32 %v1933, 0.5
        %v1942 = vmul.f32 %v1934, 0.5
        %v1943 = vmul.f32 %v1935, 0.5
        %v1944 = vmul.f32 %v1936, 0.5
        %v1945 = vmul.f32 %v1937, 0.5
        %v1946 = vmul.f32 %v1938, 0.5
        %v1947 = vmul.f32 %v1939, 0.5
        %v1948 = vmul.f32 %v1833, %v1940
        %v1949 = vmul.f32 %v1835, %v1941
        %v1950 = vmul.f32 %v1876, %v1942
        %v1951 = vmul.f32 %v1878, %v1943
        %v1952 = vmul.f32 %v1837, %v1944
        %v1953 = vmul.f32 %v1839, %v1945
        %v1954 = vmul.f32 %v1880, %v1946
        %v1955 = vmul.f32 %v1882, %v1947
        %v1956 = vpack.c.bf16 %v1952, %v1948
        %v1957 = vpack.c.bf16 %v1953, %v1949
        %v1958 = vpack.c.bf16 %v1954, %v1950
        %v1959 = vpack.c.bf16 %v1955, %v1951
        %v1960 = vld [vmem:[%s524] sm:$0xf]
        %v1961 = vld [vmem:[%s524 + $0x4] sm:$0xf]
        %v1962 = vld [vmem:[%s524 + $0x8] sm:$0xf]
        %v1963 = vld [vmem:[%s524 + $0xc] sm:$0xf]
        %v1964 = vld [vmem:[%s524 + $0x10] sm:$0xf]
        %v1965 = vld [vmem:[%s524 + $0x14] sm:$0xf]
        %v1966 = vld [vmem:[%s524 + $0x18] sm:$0xf]
        %v1967 = vld [vmem:[%s524 + $0x1c] sm:$0xf]
        %v1968 = vld [vmem:[%s524 + $0x20] sm:$0xf]
        %v1969 = vld [vmem:[%s524 + $0x24] sm:$0xf]
        %v1970 = vld [vmem:[%s524 + $0x28] sm:$0xf]
        %v1971 = vld [vmem:[%s524 + $0x2c] sm:$0xf]
        %v1972 = vld [vmem:[%s524 + $0x30] sm:$0xf]
        %v1973 = vld [vmem:[%s524 + $0x34] sm:$0xf]
        %v1974 = vld [vmem:[%s524 + $0x38] sm:$0xf]
        %v1975 = vld [vmem:[%s524 + $0x3c] sm:$0xf]
        %v1976 = vld [vmem:[%s524 + $0x40] sm:$0xf]
        %v1977 = vld [vmem:[%s524 + $0x44] sm:$0xf]
        %v1978 = vld [vmem:[%s524 + $0x48] sm:$0xf]
        %v1979 = vld [vmem:[%s524 + $0x4c] sm:$0xf]
        %v1980 = vld [vmem:[%s524 + $0x50] sm:$0xf]
        %v1981 = vld [vmem:[%s524 + $0x54] sm:$0xf]
        %v1982 = vld [vmem:[%s524 + $0x58] sm:$0xf]
        %v1983 = vld [vmem:[%s524 + $0x5c] sm:$0xf]
        %v1984 = vld [vmem:[%s524 + $0x60] sm:$0xf]
        %v1985 = vld [vmem:[%s524 + $0x64] sm:$0xf]
        %v1986 = vld [vmem:[%s524 + $0x68] sm:$0xf]
        %v1987 = vld [vmem:[%s524 + $0x6c] sm:$0xf]
        %v1988 = vld [vmem:[%s524 + $0x70] sm:$0xf]
        %v1989 = vld [vmem:[%s524 + $0x74] sm:$0xf]
        %v1990 = vld [vmem:[%s524 + $0x78] sm:$0xf]
        %v1991 = vld [vmem:[%s524 + $0x7c] sm:$0xf]
        %v1992 = vld [vmem:[%s524 + $0x80] sm:$0xf]
        %v1993 = vld [vmem:[%s524 + $0x84] sm:$0xf]
        %v1994 = vld [vmem:[%s524 + $0x88] sm:$0xf]
        %v1995 = vld [vmem:[%s524 + $0x8c] sm:$0xf]
        %v1996 = vld [vmem:[%s524 + $0x90] sm:$0xf]
        %v1997 = vld [vmem:[%s524 + $0x94] sm:$0xf]
        %v1998 = vld [vmem:[%s524 + $0x98] sm:$0xf]
        %v1999 = vld [vmem:[%s524 + $0x9c] sm:$0xf]
        %v2000 = vld [vmem:[%s524 + $0xa0] sm:$0xf]
        %v2001 = vld [vmem:[%s524 + $0xa4] sm:$0xf]
        %v2002 = vld [vmem:[%s524 + $0xa8] sm:$0xf]
        %v2003 = vld [vmem:[%s524 + $0xac] sm:$0xf]
        %v2004 = vld [vmem:[%s524 + $0xb0] sm:$0xf]
        %v2005 = vld [vmem:[%s524 + $0xb4] sm:$0xf]
        %v2006 = vld [vmem:[%s524 + $0xb8] sm:$0xf]
        %v2007 = vld [vmem:[%s524 + $0xbc] sm:$0xf]
        %v2008 = vld [vmem:[%s524 + $0xc0] sm:$0xf]
        %v2009 = vld [vmem:[%s524 + $0xc4] sm:$0xf]
        %v2010 = vld [vmem:[%s524 + $0xc8] sm:$0xf]
        %v2011 = vld [vmem:[%s524 + $0xcc] sm:$0xf]
        %v2012 = vld [vmem:[%s524 + $0xd0] sm:$0xf]
        %v2013 = vld [vmem:[%s524 + $0xd4] sm:$0xf]
        %v2014 = vld [vmem:[%s524 + $0xd8] sm:$0xf]
        %v2015 = vld [vmem:[%s524 + $0xdc] sm:$0xf]
        %v2016 = vld [vmem:[%s524 + $0xe0] sm:$0xf]
        %v2017 = vld [vmem:[%s524 + $0xe4] sm:$0xf]
        %v2018 = vld [vmem:[%s524 + $0xe8] sm:$0xf]
        %v2019 = vld [vmem:[%s524 + $0xec] sm:$0xf]
        %v2020 = vld [vmem:[%s524 + $0xf0] sm:$0xf]
        %v2021 = vld [vmem:[%s524 + $0xf4] sm:$0xf]
        %v2022 = vld [vmem:[%s524 + $0xf8] sm:$0xf]
        %v2023 = vld [vmem:[%s524 + $0xfc] sm:$0xf]
        %v2024 = vld [vmem:[%s614 + $0x3] sm:$0x1]
        %v2025 = vlaneseq
        %v2026 = vshrl.u32 %v2025, 7
        %v2027 = vsub.s32 0, %v2026
        %v2028 = vrot.slane %v2024, %v2027
        %v2093 = vunpack.c.l.b16 %v1960
        %v2094 = vunpack.c.l.b16 %v1961
        %v2095 = vunpack.c.l.b16 %v1962
        %v2096 = vunpack.c.l.b16 %v1963
        %v2097 = vunpack.c.l.b16 %v1964
        %v2098 = vunpack.c.l.b16 %v1965
        %v2099 = vunpack.c.l.b16 %v1966
        %v2100 = vunpack.c.l.b16 %v1967
        %v2101 = vunpack.c.l.b16 %v1968
        %v2102 = vunpack.c.l.b16 %v1969
        %v2103 = vunpack.c.l.b16 %v1970
        %v2104 = vunpack.c.l.b16 %v1971
        %v2105 = vunpack.c.l.b16 %v1972
        %v2106 = vunpack.c.l.b16 %v1973
        %v2107 = vunpack.c.l.b16 %v1974
        %v2108 = vunpack.c.l.b16 %v1975
        %v2109 = vunpack.c.l.b16 %v1976
        %v2110 = vunpack.c.l.b16 %v1977
        %v2111 = vunpack.c.l.b16 %v1978
        %v2112 = vunpack.c.l.b16 %v1979
        %v2113 = vunpack.c.l.b16 %v1980
        %v2114 = vunpack.c.l.b16 %v1981
        %v2115 = vunpack.c.l.b16 %v1982
        %v2116 = vunpack.c.l.b16 %v1983
        %v2117 = vunpack.c.l.b16 %v1984
        %v2118 = vunpack.c.l.b16 %v1985
        %v2119 = vunpack.c.l.b16 %v1986
        %v2120 = vunpack.c.l.b16 %v1987
        %v2121 = vunpack.c.l.b16 %v1988
        %v2122 = vunpack.c.l.b16 %v1989
        %v2123 = vunpack.c.l.b16 %v1990
        %v2124 = vunpack.c.l.b16 %v1991
        %v2125 = vunpack.c.l.b16 %v1992
        %v2126 = vunpack.c.l.b16 %v1993
        %v2127 = vunpack.c.l.b16 %v1994
        %v2128 = vunpack.c.l.b16 %v1995
        %v2129 = vunpack.c.l.b16 %v1996
        %v2130 = vunpack.c.l.b16 %v1997
        %v2131 = vunpack.c.l.b16 %v1998
        %v2132 = vunpack.c.l.b16 %v1999
        %v2133 = vunpack.c.l.b16 %v2000
        %v2134 = vunpack.c.l.b16 %v2001
        %v2135 = vunpack.c.l.b16 %v2002
        %v2136 = vunpack.c.l.b16 %v2003
        %v2137 = vunpack.c.l.b16 %v2004
        %v2138 = vunpack.c.l.b16 %v2005
        %v2139 = vunpack.c.l.b16 %v2006
        %v2140 = vunpack.c.l.b16 %v2007
        %v2141 = vunpack.c.l.b16 %v2008
        %v2142 = vunpack.c.l.b16 %v2009
        %v2143 = vunpack.c.l.b16 %v2010
        %v2144 = vunpack.c.l.b16 %v2011
        %v2145 = vunpack.c.l.b16 %v2012
        %v2146 = vunpack.c.l.b16 %v2013
        %v2147 = vunpack.c.l.b16 %v2014
        %v2148 = vunpack.c.l.b16 %v2015
        %v2149 = vunpack.c.l.b16 %v2016
        %v2150 = vunpack.c.l.b16 %v2017
        %v2151 = vunpack.c.l.b16 %v2018
        %v2152 = vunpack.c.l.b16 %v2019
        %v2153 = vunpack.c.l.b16 %v2020
        %v2154 = vunpack.c.l.b16 %v2021
        %v2155 = vunpack.c.l.b16 %v2022
        %v2156 = vunpack.c.l.b16 %v2023
        %v2157 = vpack.c.b16 %v2094, %v2093
        %v2158 = vpack.c.b16 %v2096, %v2095
        %v2159 = vpack.c.b16 %v2098, %v2097
        %v2160 = vpack.c.b16 %v2100, %v2099
        %v2161 = vpack.c.b16 %v2102, %v2101
        %v2162 = vpack.c.b16 %v2104, %v2103
        %v2163 = vpack.c.b16 %v2106, %v2105
        %v2164 = vpack.c.b16 %v2108, %v2107
        %v2165 = vpack.c.b16 %v2110, %v2109
        %v2166 = vpack.c.b16 %v2112, %v2111
        %v2167 = vpack.c.b16 %v2114, %v2113
        %v2168 = vpack.c.b16 %v2116, %v2115
        %v2169 = vpack.c.b16 %v2118, %v2117
        %v2170 = vpack.c.b16 %v2120, %v2119
        %v2171 = vpack.c.b16 %v2122, %v2121
        %v2172 = vpack.c.b16 %v2124, %v2123
        %v2173 = vpack.c.b16 %v2126, %v2125
        %v2174 = vpack.c.b16 %v2128, %v2127
        %v2175 = vpack.c.b16 %v2130, %v2129
        %v2176 = vpack.c.b16 %v2132, %v2131
        %v2177 = vpack.c.b16 %v2134, %v2133
        %v2178 = vpack.c.b16 %v2136, %v2135
        %v2179 = vpack.c.b16 %v2138, %v2137
        %v2180 = vpack.c.b16 %v2140, %v2139
        %v2181 = vpack.c.b16 %v2142, %v2141
        %v2182 = vpack.c.b16 %v2144, %v2143
        %v2183 = vpack.c.b16 %v2146, %v2145
        %v2184 = vpack.c.b16 %v2148, %v2147
        %v2185 = vpack.c.b16 %v2150, %v2149
        %v2186 = vpack.c.b16 %v2152, %v2151
        %v2187 = vpack.c.b16 %v2154, %v2153
        %v2188 = vpack.c.b16 %v2156, %v2155
        %2221 = vmatprep.subr.bf16.mxu0 0
        %2222 = vmatpush1.bf16.msra.mxu0 %v2157
        %2223 = vmatprep.subr.bf16.mxu0 0
        %2224 = vmatpush1.bf16.msra.mxu0 %v2158
        %2225 = vmatprep.subr.bf16.mxu0 0
        %2226 = vmatpush1.bf16.msra.mxu0 %v2159
        %2227 = vmatprep.subr.bf16.mxu0 0
        %2228 = vmatpush1.bf16.msra.mxu0 %v2160
        %2229 = vmatprep.subr.bf16.mxu0 0
        %2230 = vmatpush1.bf16.msra.mxu0 %v2161
        %2231 = vmatprep.subr.bf16.mxu0 0
        %2232 = vmatpush1.bf16.msra.mxu0 %v2162
        %2233 = vmatprep.subr.bf16.mxu0 0
        %2234 = vmatpush1.bf16.msra.mxu0 %v2163
        %2235 = vmatprep.subr.bf16.mxu0 0
        %2236 = vmatpush1.bf16.msra.mxu0 %v2164
        %2237 = vmatprep.subr.bf16.mxu0 0
        %2238 = vmatpush1.bf16.msra.mxu0 %v2165
        %2239 = vmatprep.subr.bf16.mxu0 0
        %2240 = vmatpush1.bf16.msra.mxu0 %v2166
        %2241 = vmatprep.subr.bf16.mxu0 0
        %2242 = vmatpush1.bf16.msra.mxu0 %v2167
        %2243 = vmatprep.subr.bf16.mxu0 0
        %2244 = vmatpush1.bf16.msra.mxu0 %v2168
        %2245 = vmatprep.subr.bf16.mxu0 0
        %2246 = vmatpush1.bf16.msra.mxu0 %v2169
        %2247 = vmatprep.subr.bf16.mxu0 0
        %2248 = vmatpush1.bf16.msra.mxu0 %v2170
        %2249 = vmatprep.subr.bf16.mxu0 0
        %2250 = vmatpush1.bf16.msra.mxu0 %v2171
        %2251 = vmatprep.subr.bf16.mxu0 0
        %2252 = vmatpush1.bf16.msra.mxu0 %v2172
        %2253 = vmatprep.mubr.bf16.mxu0 %v1957
        %2254 = vmatmul.mubr.bf16.gmra.mrb[0].mxu0 %v1956
        %v2255 = vpop.f32.mrb[0].mxu0
        %v2256 = vadd.f32 %v2028, %v2255
        %v2257 = vpop.f32.mrb[0].mxu0
        %v2258 = vpop.f32.mrb[0].mxu0
        %v2259 = vadd.f32 %v2028, %v2258
        %v2260 = vpop.f32.mrb[0].mxu0
        %2261 = vdwg.mxu0
        %2262 = vmatprep.subr.bf16.mxu0 0
        %2263 = vmatpush1.bf16.msra.mxu0 %v2173
        %2264 = vmatprep.subr.bf16.mxu0 0
        %2265 = vmatpush1.bf16.msra.mxu0 %v2174
        %2266 = vmatprep.subr.bf16.mxu0 0
        %2267 = vmatpush1.bf16.msra.mxu0 %v2175
        %2268 = vmatprep.subr.bf16.mxu0 0
        %2269 = vmatpush1.bf16.msra.mxu0 %v2176
        %2270 = vmatprep.subr.bf16.mxu0 0
        %2271 = vmatpush1.bf16.msra.mxu0 %v2177
        %2272 = vmatprep.subr.bf16.mxu0 0
        %2273 = vmatpush1.bf16.msra.mxu0 %v2178
        %2274 = vmatprep.subr.bf16.mxu0 0
        %2275 = vmatpush1.bf16.msra.mxu0 %v2179
        %2276 = vmatprep.subr.bf16.mxu0 0
        %2277 = vmatpush1.bf16.msra.mxu0 %v2180
        %2278 = vmatprep.subr.bf16.mxu0 0
        %2279 = vmatpush1.bf16.msra.mxu0 %v2181
        %2280 = vmatprep.subr.bf16.mxu0 0
        %2281 = vmatpush1.bf16.msra.mxu0 %v2182
        %2282 = vmatprep.subr.bf16.mxu0 0
        %2283 = vmatpush1.bf16.msra.mxu0 %v2183
        %2284 = vmatprep.subr.bf16.mxu0 0
        %2285 = vmatpush1.bf16.msra.mxu0 %v2184
        %2286 = vmatprep.subr.bf16.mxu0 0
        %2287 = vmatpush1.bf16.msra.mxu0 %v2185
        %2288 = vmatprep.subr.bf16.mxu0 0
        %2289 = vmatpush1.bf16.msra.mxu0 %v2186
        %2290 = vmatprep.subr.bf16.mxu0 0
        %2291 = vmatpush1.bf16.msra.mxu0 %v2187
        %2292 = vmatprep.subr.bf16.mxu0 0
        %2293 = vmatpush1.bf16.msra.mxu0 %v2188
        %2294 = vmatprep.mubr.bf16.mxu0 %v1959
        %2295 = vmatmul.mubr.bf16.gmra.mrb[0].mxu0 %v1958
        %v2296 = vpop.f32.mrb[0].mxu0
        %v2297 = vadd.f32 %v2256, %v2296
        %v2298 = vpop.f32.mrb[0].mxu0
        %v2299 = vpop.f32.mrb[0].mxu0
        %v2300 = vadd.f32 %v2259, %v2299
        %v2301 = vpop.f32.mrb[0].mxu0
        %2302 = vdwg.mxu0
        %v2303 = vadd.f32 %v1581, %v2297
        %v2304 = vadd.f32 %v1582, %v2300
        %v2305 = vld [vmem:[%s614 + $0x4] sm:$0x1]
        %v2306 = vld [vmem:[%s614 + $0x5] sm:$0x1]
        %2307 = vadd.xlane.f32.xlu0 %v2303
        %v2308 = vpop.xlane.xlu0 %2307
        %2309 = vadd.xlane.f32.xlu0 %v2304
        %v2310 = vpop.xlane.xlu0 %2309
        %v2311 = vmul.f32 %v2308, %v1552
        %v2312 = vmul.f32 %v2310, %v1552
        %v2313 = vsub.f32 %v2303, %v2311
        %v2314 = vsub.f32 %v2304, %v2312
        %v2315 = vmul.f32 %v2313, %v2313
        %v2316 = vmul.f32 %v2314, %v2314
        %2317 = vadd.xlane.f32.xlu0 %v2315
        %v2318 = vpop.xlane.xlu0 %2317
        %2319 = vadd.xlane.f32.xlu0 %v2316
        %v2320 = vpop.xlane.xlu0 %2319
        %v2321 = vmul.f32 %v2318, %v1552
        %v2322 = vmul.f32 %v2320, %v1552
        %v2323 = vadd.f32 %v2321, 1e-12
        %v2324 = vadd.f32 %v2322, 1e-12
        %v2325 = vrsqrt.pop %v2323
        %v2326 = vrsqrt.pop %v2324
        %v2327 = vmul.f32 %v2313, %v2325
        %v2328 = vmul.f32 %v2314, %v2326
        %v2329 = vlaneseq
        %v2330 = vshrl.u32 %v2329, 7
        %v2331 = vsub.s32 0, %v2330
        %v2332 = vrot.slane %v2305, %v2331
        %v2333 = vmul.f32 %v2327, %v2332
        %v2334 = vmul.f32 %v2328, %v2332
        %v2335 = vlaneseq
        %v2336 = vshrl.u32 %v2335, 7
        %v2337 = vsub.s32 0, %v2336
        %v2338 = vrot.slane %v2306, %v2337
        %v2339 = vadd.f32 %v2333, %v2338
        %v2340 = vadd.f32 %v2334, %v2338
        %2341 = vst [vmem:[#allocation2] sm:$0xff] %v2339
        %2342 = vst [vmem:[#allocation2 + $0x8] sm:$0xff] %v2340
        %p2343 = scmp.eq.s32.totalorder %s38, 1
        // Predicated region
        $region85: #{tpu_custom_call.1} parent=59 // pred_check
          %p2344 = pneg %p2343
        $region86: #{tpu_custom_call.1} parent=59 // pred_check_branch
          %2346 = sbr.rel (%p2344) target = $region88
        $region87: #{tpu_custom_call.1} parent=59 // pred_region
          %vm2347 = vcmp.ge.f32.partialorder %v665, -0.5
          %vm2348 = vcmp.ge.f32.partialorder %v666, -0.5
          %v2349 = vsel %vm2347, 1, 0
          %v2350 = vsel %vm2348, 1, 0
          %v2351 = vcvt.s32.f32 %v2349
          %v2352 = vcvt.s32.f32 %v2350
          %v2354 = vsel %vm1039, %v2351, 0
          %2356 = vmatprep.subr.mxu0 0.0
          %2357 = vmatpush1.msra.mxu0 %v2339
          %2358 = vmatprep.subr.mxu0 0.0
          %2359 = vmatpush1.msra.mxu0 0.0
          %2360 = vmatprep.subr.mxu0 0.0
          %2361 = vmatpush1.msra.mxu0 0.0
          %2362 = vmatprep.subr.mxu0 0.0
          %2363 = vmatpush1.msra.mxu0 0.0
          %2364 = vmatprep.subr.mxu0 0.0
          %2365 = vmatpush1.msra.mxu0 0.0
          %2366 = vmatprep.subr.mxu0 0.0
          %2367 = vmatpush1.msra.mxu0 0.0
          %2368 = vmatprep.subr.mxu0 0.0
          %2369 = vmatpush1.msra.mxu0 0.0
          %2370 = vmatprep.subr.mxu0 0.0
          %2371 = vmatpush1.msra.mxu0 0.0
          %2372 = vmatprep.subr.mxu0 0.0
          %2373 = vmatpush1.msra.mxu0 0.0
          %2374 = vmatprep.subr.mxu0 0.0
          %2375 = vmatpush1.msra.mxu0 0.0
          %2376 = vmatprep.subr.mxu0 0.0
          %2377 = vmatpush1.msra.mxu0 0.0
          %2378 = vmatprep.subr.mxu0 0.0
          %2379 = vmatpush1.msra.mxu0 0.0
          %2380 = vmatprep.subr.mxu0 0.0
          %2381 = vmatpush1.msra.mxu0 0.0
          %2382 = vmatprep.subr.mxu0 0.0
          %2383 = vmatpush1.msra.mxu0 0.0
          %2384 = vmatprep.subr.mxu0 0.0
          %2385 = vmatpush1.msra.mxu0 0.0
          %2386 = vmatprep.subr.mxu0 0.0
          %2387 = vmatpush1.msra.mxu0 0.0
          %2388 = vmatprep.subr.mxu0 0.0
          %2389 = vmatpush1.msra.mxu0 0.0
          %2390 = vmatprep.subr.mxu0 0.0
          %2391 = vmatpush1.msra.mxu0 0.0
          %2392 = vmatprep.subr.mxu0 0.0
          %2393 = vmatpush1.msra.mxu0 0.0
          %2394 = vmatprep.subr.mxu0 0.0
          %2395 = vmatpush1.msra.mxu0 0.0
          %2396 = vmatprep.subr.mxu0 0.0
          %2397 = vmatpush1.msra.mxu0 0.0
          %2398 = vmatprep.subr.mxu0 0.0
          %2399 = vmatpush1.msra.mxu0 0.0
          %2400 = vmatprep.subr.mxu0 0.0
          %2401 = vmatpush1.msra.mxu0 0.0
          %2402 = vmatprep.subr.mxu0 0.0
          %2403 = vmatpush1.msra.mxu0 0.0
          %2404 = vmatprep.subr.mxu0 0.0
          %2405 = vmatpush1.msra.mxu0 0.0
          %2406 = vmatprep.subr.mxu0 0.0
          %2407 = vmatpush1.msra.mxu0 0.0
          %2408 = vmatprep.subr.mxu0 0.0
          %2409 = vmatpush1.msra.mxu0 0.0
          %2410 = vmatprep.subr.mxu0 0.0
          %2411 = vmatpush1.msra.mxu0 0.0
          %2412 = vmatprep.subr.mxu0 0.0
          %2413 = vmatpush1.msra.mxu0 0.0
          %2414 = vmatprep.subr.mxu0 0.0
          %2415 = vmatpush1.msra.mxu0 0.0
          %2416 = vmatprep.subr.mxu0 0.0
          %2417 = vmatpush1.msra.mxu0 0.0
          %2418 = vmatprep.subr.mxu0 0.0
          %2419 = vmatpush1.msra.mxu0 0.0
          %2420 = vmatprep.mubr.f32.mxu0 0.0
          %2421 = vmatmul.mubr.f32.gmra.mrb[0].mxu0 %v2354
          %v2422 = vpop.f32.mrb[0].mxu0
          %v2423 = vadd.f32 0.0, %v2422
          %v2424 = vpop.f32.mrb[0].mxu0
          %2425 = vdwg.mxu0
          %v2427 = vsel %vm1039, %v2352, 0
          %2429 = vmatprep.subr.mxu0 0.0
          %2430 = vmatpush1.msra.mxu0 %v2340
          %2431 = vmatprep.subr.mxu0 0.0
          %2432 = vmatpush1.msra.mxu0 0.0
          %2433 = vmatprep.subr.mxu0 0.0
          %2434 = vmatpush1.msra.mxu0 0.0
          %2435 = vmatprep.subr.mxu0 0.0
          %2436 = vmatpush1.msra.mxu0 0.0
          %2437 = vmatprep.subr.mxu0 0.0
          %2438 = vmatpush1.msra.mxu0 0.0
          %2439 = vmatprep.subr.mxu0 0.0
          %2440 = vmatpush1.msra.mxu0 0.0
          %2441 = vmatprep.subr.mxu0 0.0
          %2442 = vmatpush1.msra.mxu0 0.0
          %2443 = vmatprep.subr.mxu0 0.0
          %2444 = vmatpush1.msra.mxu0 0.0
          %2445 = vmatprep.subr.mxu0 0.0
          %2446 = vmatpush1.msra.mxu0 0.0
          %2447 = vmatprep.subr.mxu0 0.0
          %2448 = vmatpush1.msra.mxu0 0.0
          %2449 = vmatprep.subr.mxu0 0.0
          %2450 = vmatpush1.msra.mxu0 0.0
          %2451 = vmatprep.subr.mxu0 0.0
          %2452 = vmatpush1.msra.mxu0 0.0
          %2453 = vmatprep.subr.mxu0 0.0
          %2454 = vmatpush1.msra.mxu0 0.0
          %2455 = vmatprep.subr.mxu0 0.0
          %2456 = vmatpush1.msra.mxu0 0.0
          %2457 = vmatprep.subr.mxu0 0.0
          %2458 = vmatpush1.msra.mxu0 0.0
          %2459 = vmatprep.subr.mxu0 0.0
          %2460 = vmatpush1.msra.mxu0 0.0
          %2461 = vmatprep.subr.mxu0 0.0
          %2462 = vmatpush1.msra.mxu0 0.0
          %2463 = vmatprep.subr.mxu0 0.0
          %2464 = vmatpush1.msra.mxu0 0.0
          %2465 = vmatprep.subr.mxu0 0.0
          %2466 = vmatpush1.msra.mxu0 0.0
          %2467 = vmatprep.subr.mxu0 0.0
          %2468 = vmatpush1.msra.mxu0 0.0
          %2469 = vmatprep.subr.mxu0 0.0
          %2470 = vmatpush1.msra.mxu0 0.0
          %2471 = vmatprep.subr.mxu0 0.0
          %2472 = vmatpush1.msra.mxu0 0.0
          %2473 = vmatprep.subr.mxu0 0.0
          %2474 = vmatpush1.msra.mxu0 0.0
          %2475 = vmatprep.subr.mxu0 0.0
          %2476 = vmatpush1.msra.mxu0 0.0
          %2477 = vmatprep.subr.mxu0 0.0
          %2478 = vmatpush1.msra.mxu0 0.0
          %2479 = vmatprep.subr.mxu0 0.0
          %2480 = vmatpush1.msra.mxu0 0.0
          %2481 = vmatprep.subr.mxu0 0.0
          %2482 = vmatpush1.msra.mxu0 0.0
          %2483 = vmatprep.subr.mxu0 0.0
          %2484 = vmatpush1.msra.mxu0 0.0
          %2485 = vmatprep.subr.mxu0 0.0
          %2486 = vmatpush1.msra.mxu0 0.0
          %2487 = vmatprep.subr.mxu0 0.0
          %2488 = vmatpush1.msra.mxu0 0.0
          %2489 = vmatprep.subr.mxu0 0.0
          %2490 = vmatpush1.msra.mxu0 0.0
          %2491 = vmatprep.subr.mxu0 0.0
          %2492 = vmatpush1.msra.mxu0 0.0
          %2493 = vmatprep.mubr.f32.mxu0 0.0
          %2494 = vmatmul.mubr.f32.gmra.mrb[0].mxu0 %v2427
          %v2495 = vpop.f32.mrb[0].mxu0
          %v2496 = vadd.f32 0.0, %v2495
          %v2497 = vpop.f32.mrb[0].mxu0
          %2498 = vdwg.mxu0
          %vm2499 = vcmask 57344
          %v2500 = vsel %vm2499, %v2351, 0.0
          %2501 = vadd.xlane.f32.xlu0 %v2500
          %v2502 = vpop.xlane.xlu0 %2501
          %v2503 = vsel %vm2499, %v2352, 0.0
          %2504 = vadd.xlane.f32.xlu0 %v2503
          %v2505 = vpop.xlane.xlu0 %2504
          %v2506 = vmax.f32 %v2502, 1e-09
          %v2507 = vmax.f32 %v2505, 1e-09
          %v2508 = vrcp.pop %v2506
          %v2509 = vmul.f32 %v2423, %v2508
          %v2510 = vrcp.pop %v2507
          %v2511 = vmul.f32 %v2496, %v2510
          %2512 = vst [vmem:[%s596] sm:$0x1] %v2509
          %2513 = vst [vmem:[%s596 + $0x1] sm:$0x1] %v2511
        $region88: #{tpu_custom_call.1} parent=59 // pred_fallthru
          _
        %s2514 = sand.u32 %s308, 1
        %s2515 = scalar_lea.sflag [#allocation5], %s2514
        %s2516 = sand.u32 %s308, 1
        %s2517 = smul.addr %s2516, 2
        %s2518 = scalar_lea.vmem [#allocation12], %s2517
        // Predicated region
        $region89: #{tpu_custom_call.1} parent=59 // pred_check
          %p2519 = pneg %p318
        $region90: #{tpu_custom_call.1} parent=59 // pred_check_branch
          %2521 = sbr.rel (%p2519) target = $region92
        $region91: #{tpu_custom_call.1} parent=59 // pred_region
          %s2522 = smul.u32 2, %s37
          %s2524 = ssub.s32 32, 32
          %2525 = vsyncadd %s2515, %s2524
          %s2526 = smul.addr %s2522, 16
          %s2527 = scalar_lea.hbm %s10, %s2526
          %s2528 = sshll.u32 %s2518, 4
          %s2529 = int_to_ptr.vmem [resolvable:$true] %s2528
          %2534 = dma.vmem_to_hbm [thread:$0]  %s2529, 32, %s2527, %s2515, 16, 16, 1
        $region92: #{tpu_custom_call.1} parent=59 // pred_fallthru
          _
      $region60: #{tpu_custom_call.1} parent=5 // pred_fallthru
        _
      %p2535 = scmp.le.s32.totalorder 2, %s28
      // Predicated region
      $region93: #{tpu_custom_call.1} parent=5 // pred_check
        %p2536 = pneg %p2535
      $region94: #{tpu_custom_call.1} parent=5 // pred_check_branch
        %2538 = sbr.rel (%p2536) target = $region96
      $region95: #{tpu_custom_call.1} parent=5 // pred_region
        %s2539 = ssub.s32 %s28, 2
        // Predicated region
        $region97: #{tpu_custom_call.1} parent=95 // pred_check
          %p2540 = pneg %p324
        $region98: #{tpu_custom_call.1} parent=95 // pred_check_branch
          %2542 = sbr.rel (%p2540) target = $region100
        $region99: #{tpu_custom_call.1} parent=95 // pred_region
          %s2543 = sand.u32 %s309, 1
          %s2544 = scalar_lea.sflag [#allocation5], %s2543
          %s2545 = sand.u32 %s309, 1
          %s2546 = smul.addr %s2545, 2
          %s2547 = scalar_lea.vmem [#allocation12], %s2546
          %2548 = dma.done %s2544, 32
        $region100: #{tpu_custom_call.1} parent=95 // pred_fallthru
          _
      $region96: #{tpu_custom_call.1} parent=5 // pred_fallthru
        _
    $region6: #{tpu_custom_call.1} parent=1 // loop_footer
      %s32 = sadd.s32 1, %s28
    $region7: #{tpu_custom_call.1} parent=1 // loop_footer_branch
      %27 = sbr.rel target = $region3
    $region8: #{tpu_custom_call.1} parent=1 // loop_exit
      _
    %2549 = vsyncpa [#allocation4], 1
    %s2550 = scalar_lea.sflag [#allocation4], 1
    %2551 = vsyncpa %s2550, 1
    %2552 = vsyncpa [#allocation7], 1
    %s2553 = scalar_lea.sflag [#allocation7], 1
    %2554 = vsyncpa %s2553, 1
    %2555 = vsyncpa [#allocation10], 1
    %s2556 = scalar_lea.sflag [#allocation10], 1
    %2557 = vsyncpa %s2556, 1
    %2558 = vsyncpa [#allocation5], 1
    %s2559 = scalar_lea.sflag [#allocation5], 1
    %2560 = vsyncpa %s2559, 1

</llo_original>
